<compile_context>
chip_gen: v6e
topology: v6e:2x2x1
jax: 0.10.0
libtpu: 0.0.40
codegen_flags: <defaults>
</compile_context>

<pallas_src>
import jax
import jax.numpy as jnp
from jax import lax
from jax.experimental import pallas as pl
from jax.experimental.pallas import tpu as pltpu


def linear_kernel(x_ref, w_ref, b_ref, o_ref):
    # x_ref: (M, K), w_ref: (tn, K)  -> contract K against K (W stays (N, K)).
    acc = lax.dot_general(
        x_ref[...],
        w_ref[...],
        (((1,), (1,)), ((), ())),          # x's dim 1 with w's dim 1
        preferred_element_type=jnp.float32,
    )
    o_ref[...] = (acc + b_ref[...]).astype(o_ref.dtype)


def linear_pallas(x, w, b, *, tn=512):
    """y = x @ w.T + b   (PyTorch nn.Linear semantics, w in (out, in) layout)."""
    M, K = x.shape
    N = w.shape[0]
    assert w.shape == (N, K) and b.shape == (N,)
    assert N % tn == 0, f"out_features={N} must be divisible by tn={tn}"

    b2 = b.reshape(1, N)
    grid = (N // tn,)

    return pl.pallas_call(
        linear_kernel,
        out_shape=jax.ShapeDtypeStruct((M, N), x.dtype),
        grid_spec=pltpu.PrefetchScalarGridSpec(
            num_scalar_prefetch=0,
            grid=grid,
            in_specs=[
                pl.BlockSpec((M, K), lambda n: (0, 0)),    # x: full, resident
                pl.BlockSpec((tn, K), lambda n: (n, 0)),   # W tile, (N, K) layout
                pl.BlockSpec((1, tn), lambda n: (0, n)),   # bias tile
            ],
            out_specs=pl.BlockSpec((M, tn), lambda n: (0, n)),
        ),
        compiler_params=pltpu.CompilerParams(
            dimension_semantics=("parallel",)
        ),
    )(x, w, b2)


if __name__ == "__main__":
    key = jax.random.PRNGKey(0)
    kx, kw, kb = jax.random.split(key, 3)

    batch, in_features, out_features = 8, 1024, 1024

    x = jax.random.normal(kx, (batch, in_features), dtype=jnp.float32)
    # Deterministic parameter init (mimics nn.Linear's uniform(-1/sqrt(in), 1/sqrt(in)))
    bound = 1.0 / jnp.sqrt(jnp.float32(in_features))
    w = jax.random.uniform(
        kw, (out_features, in_features), minval=-bound, maxval=bound, dtype=jnp.float32
    )
    b = jax.random.uniform(
        kb, (out_features,), minval=-bound, maxval=bound, dtype=jnp.float32
    )

    y = linear_pallas(x, w, b)
    jax.block_until_ready(y)

    # Correctness check against plain JAX reference
    y_ref = x @ w.T + b
    assert y.shape == (batch, out_features)
    assert jnp.allclose(y, y_ref, atol=1e-4, rtol=1e-4)

    print("KERNEL_OK")
</pallas_src>

<mosaic_0001>
module attributes {stable_mosaic.version = 11 : i64} {
  func.func @linear_kernel(%arg0: i32, %arg1: memref<8x1024xf32, #tpu.memory_space<vmem>>, %arg2: memref<512x1024xf32, #tpu.memory_space<vmem>>, %arg3: memref<1x512xf32, #tpu.memory_space<vmem>>, %arg4: memref<8x512xf32, #tpu.memory_space<vmem>>) attributes {dimension_semantics = [#tpu.dimension_semantics<parallel>], iteration_bounds = array<i64: 2>, scalar_prefetch = 0 : i64, scratch_operands = 0 : i64, tpu.core_type = #tpu.core_type<tc>, window_params = [{pipeline_mode = #tpu.pipeline_mode<synchronous>, transform_indices = @transform_0, window_bounds = array<i64: 8, 1024>}, {transform_indices = @transform_1, window_bounds = array<i64: 512, 1024>}, {transform_indices = @transform_2, window_bounds = array<i64: 1, 512>}, {transform_indices = @transform_3, window_bounds = array<i64: 8, 512>}]} {
    %c0 = arith.constant 0 : index
    %c0_0 = arith.constant 0 : index
    %0 = vector.load %arg1[%c0, %c0_0] : memref<8x1024xf32, #tpu.memory_space<vmem>>, vector<8x1024xf32>
    %c0_1 = arith.constant 0 : index
    %c0_2 = arith.constant 0 : index
    %1 = vector.load %arg2[%c0_1, %c0_2] : memref<512x1024xf32, #tpu.memory_space<vmem>>, vector<512x1024xf32>
    %cst = arith.constant dense<0.000000e+00> : vector<8x512xf32>
    %2 = tpu.matmul %0, %1, %cst {dimension_numbers = #tpu.dot_dimension_numbers<[1], [1], [0], [0], [0, 0, 1, 0], [], []>} : vector<8x1024xf32>, vector<512x1024xf32>, vector<8x512xf32> -> vector<8x512xf32>
    %c0_3 = arith.constant 0 : index
    %c0_4 = arith.constant 0 : index
    %3 = vector.load %arg3[%c0_3, %c0_4] : memref<1x512xf32, #tpu.memory_space<vmem>>, vector<1x512xf32>
    %4 = vector.broadcast %3 : vector<1x512xf32> to vector<8x512xf32>
    %5 = arith.addf %2, %4 : vector<8x512xf32>
    %c0_5 = arith.constant 0 : index
    %c0_6 = arith.constant 0 : index
    %6 = vector.load %arg4[%c0_5, %c0_6] : memref<8x512xf32, #tpu.memory_space<vmem>>, vector<8x512xf32>
    tpu.vector_store %arg4[%c0_5, %c0_6], %5 {strides = array<i32>} : memref<8x512xf32, #tpu.memory_space<vmem>>, vector<8x512xf32>,
    return
  }
  func.func @transform_0(%arg0: i32) -> (i32, i32) {
    %c0_i32 = arith.constant 0 : i32
    %c0_i32_0 = arith.constant 0 : i32
    %c0_i32_1 = arith.constant 0 : i32
    return %c0_i32, %c0_i32_0 : i32, i32
  }
  func.func @transform_1(%arg0: i32) -> (i32, i32) {
    %c0_i32 = arith.constant 0 : i32
    %c0_i32_0 = arith.constant 0 : i32
    return %arg0, %c0_i32 : i32, i32
  }
  func.func @transform_2(%arg0: i32) -> (i32, i32) {
    %c0_i32 = arith.constant 0 : i32
    %c0_i32_0 = arith.constant 0 : i32
    return %c0_i32, %arg0 : i32, i32
  }
  func.func @transform_3(%arg0: i32) -> (i32, i32) {
    %c0_i32 = arith.constant 0 : i32
    %c0_i32_0 = arith.constant 0 : i32
    return %c0_i32, %arg0 : i32, i32
  }
}

</mosaic_0001>

<llo_original>
// kernel: tpu_custom_call.1
$region0: #{tpu_custom_call.1}
  #allocation0 [shape = 'u32[]', space=smem, size = 0x4, offset = 0x4, fixed_abs, tag = 'smem constant byte address 0x4 - core index']
  #allocation1 [shape = 'u32[144,128]{1,0:T(1,128)}', space=vmem, size = 0x12000, scoped, tag = 'internal scratch']
  %s0 = inlined_call_operand.hbm [shape: f32[8,1024], index: 0, kind: input, shape index: {}]
  %s1 = inlined_call_operand.hbm [shape: f32[1024,1024], index: 1, kind: input, shape index: {}]
  %s2 = inlined_call_operand.hbm [shape: f32[1,1024], index: 2, kind: input, shape index: {}]
  %s3 = inlined_call_operand.hbm [shape: f32[8,1024], index: 3, kind: output, shape index: {}]
  %s4 = sld [smem:[#allocation0]]
  $region57: #{tpu_custom_call.1} parent=0
    _
  %s6 = ssub.s32 1, %s4
  %s7 = scalar_select 0, %s6, %s4
  $region1: #{tpu_custom_call.1} parent=0
    #allocation2 [shape = 'u8[32768]{0}', space=vmem, size = 0x8000, scoped, tag = 'input window, operand 0, single buffered']
    #allocation3 [shape = 's32[2]{0}', space=sflag, size = 0x8, scoped, tag = 'scoped memory for tpu_custom_call.1']
    #allocation4 [shape = 's32[2]{0}', space=sflag, size = 0x8, scoped, tag = 'scoped memory for tpu_custom_call.1']
    #allocation5 [shape = 'u8[4194304]{0}', space=vmem, size = 0x400000, scoped, tag = 'input window, operand 1']
    #allocation6 [shape = 's32[2]{0}', space=sflag, size = 0x8, scoped, tag = 'scoped memory for tpu_custom_call.1']
    #allocation7 [shape = 'u8[4096]{0}', space=vmem, size = 0x1000, scoped, tag = 'input window, operand 2']
    #allocation8 [shape = 'u8[32768]{0}', space=vmem, size = 0x8000, scoped, tag = 'output window, operand 0']
    %8 = vsyncpa [#allocation3], 0
    %9 = vsyncpa [#allocation6], 0
    %s10 = scalar_lea.sflag [#allocation6], 1
    %11 = vsyncpa %s10, 0
    %12 = vsyncpa [#allocation4], 0
    %s13 = scalar_lea.sflag [#allocation4], 1
    %14 = vsyncpa %s13, 0
    loop: start=0, step=1, limit=4
    $region2: #{tpu_custom_call.1} parent=1 // loop_pre_header
      _
    $region3: #{tpu_custom_call.1} parent=1 // loop_header
      %s16 = sphi 0, %s20
      %p17 = scmp.ge.s32.totalorder %s16, 4
      %s24 = sphi 0, %s24
      %s26 = sphi 0, %s24
      %s27 = sphi 0, %s26
      %s41 = sphi 0, %s27
      %s47 = sphi 0, %s49
      %s50 = sphi 0, %s47
      %s51 = sphi 0, %s50
      %s67 = sphi 0, %s51
      %s73 = sphi 0, %s75
      %s76 = sphi 0, %s73
      %s77 = sphi 0, %s76
      %s93 = sphi 0, %s77
      %s99 = sphi 0, %s101
      %s102 = sphi 0, %s99
      %s103 = sphi 0, %s102
      %s119 = sphi 0, %s103
    $region4: #{tpu_custom_call.1} parent=1 // loop_header_branch
      %19 = sbr.rel (%p17) target = $region8
    $region5: #{tpu_custom_call.1} parent=1 // loop_body
      %s21 = ssub.s32 %s16, 1
      %s22 = ssub.s32 %s16, 2
      %s23 = sadd.s32 %s16, 1
      %s25 = sadd.s32 %s24, 1
      %p28 = scmp.eq.s32.totalorder %s16, 1
      %p29 = scmp.ne.s32.totalorder %s24, %s26
      %p30 = scmp.eq.s32.totalorder %s16, 0
      %p31 = por %p29, %p30
      %p32 = scmp.ne.s32.totalorder %s24, %s26
      %p33 = scmp.eq.s32.totalorder %s21, 1
      %p34 = por %p32, %p33
      %p35 = scmp.ne.s32.totalorder %s26, %s27
      %p36 = scmp.eq.s32.totalorder %s21, 0
      %p37 = por %p35, %p36
      %p38 = scmp.ne.s32.totalorder %s26, %s27
      %p39 = scmp.eq.s32.totalorder %s22, 1
      %p40 = por %p38, %p39
      %p42 = scmp.ne.s32.totalorder %s27, %s41
      %p43 = scmp.eq.s32.totalorder %s22, 0
      %p44 = por %p42, %p43
      %s45 = ssub.s32 %s16, %s23
      %p46 = scmp.eq.s32.totalorder %s45, 0
      %s48 = sadd.s32 %s47, 1
      %s49 = scalar_select %p46, %s47, %s48
      %p52 = pneg %p46
      %p53 = scmp.eq.s32.totalorder %s16, 1
      %p54 = por %p52, %p53
      %p55 = scmp.ne.s32.totalorder %s47, %s50
      %p56 = scmp.eq.s32.totalorder %s16, 0
      %p57 = por %p55, %p56
      %p58 = scmp.ne.s32.totalorder %s47, %s50
      %p59 = scmp.eq.s32.totalorder %s21, 1
      %p60 = por %p58, %p59
      %p61 = scmp.ne.s32.totalorder %s50, %s51
      %p62 = scmp.eq.s32.totalorder %s21, 0
      %p63 = por %p61, %p62
      %p64 = scmp.ne.s32.totalorder %s50, %s51
      %p65 = scmp.eq.s32.totalorder %s22, 1
      %p66 = por %p64, %p65
      %p68 = scmp.ne.s32.totalorder %s51, %s67
      %p69 = scmp.eq.s32.totalorder %s22, 0
      %p70 = por %p68, %p69
      %s71 = ssub.s32 %s16, %s23
      %p72 = scmp.eq.s32.totalorder %s71, 0
      %s74 = sadd.s32 %s73, 1
      %s75 = scalar_select %p72, %s73, %s74
      %p78 = pneg %p72
      %p79 = scmp.eq.s32.totalorder %s16, 1
      %p80 = por %p78, %p79
      %p81 = scmp.ne.s32.totalorder %s73, %s76
      %p82 = scmp.eq.s32.totalorder %s16, 0
      %p83 = por %p81, %p82
      %p84 = scmp.ne.s32.totalorder %s73, %s76
      %p85 = scmp.eq.s32.totalorder %s21, 1
      %p86 = por %p84, %p85
      %p87 = scmp.ne.s32.totalorder %s76, %s77
      %p88 = scmp.eq.s32.totalorder %s21, 0
      %p89 = por %p87, %p88
      %p90 = scmp.ne.s32.totalorder %s76, %s77
      %p91 = scmp.eq.s32.totalorder %s22, 1
      %p92 = por %p90, %p91
      %p94 = scmp.ne.s32.totalorder %s77, %s93
      %p95 = scmp.eq.s32.totalorder %s22, 0
      %p96 = por %p94, %p95
      %s97 = ssub.s32 %s16, %s23
      %p98 = scmp.eq.s32.totalorder %s97, 0
      %s100 = sadd.s32 %s99, 1
      %s101 = scalar_select %p98, %s99, %s100
      %p104 = pneg %p98
      %p105 = scmp.eq.s32.totalorder %s16, 1
      %p106 = por %p104, %p105
      %p107 = scmp.ne.s32.totalorder %s99, %s102
      %p108 = scmp.eq.s32.totalorder %s16, 0
      %p109 = por %p107, %p108
      %p110 = scmp.ne.s32.totalorder %s99, %s102
      %p111 = scmp.eq.s32.totalorder %s21, 1
      %p112 = por %p110, %p111
      %p113 = scmp.ne.s32.totalorder %s102, %s103
      %p114 = scmp.eq.s32.totalorder %s21, 0
      %p115 = por %p113, %p114
      %p116 = scmp.ne.s32.totalorder %s102, %s103
      %p117 = scmp.eq.s32.totalorder %s22, 1
      %p118 = por %p116, %p117
      %p120 = scmp.ne.s32.totalorder %s103, %s119
      %p121 = scmp.eq.s32.totalorder %s22, 0
      %p122 = por %p120, %p121
      %p123 = scmp.le.s32.totalorder 1, %s16
      %p124 = scmp.lt.s32.totalorder %s16, 3
      %p125 = pnand %p123, %p124
      %p126 = pneg %p125
      // Predicated region
      $region9: #{tpu_custom_call.1} parent=5 // pred_check
        _
      $region10: #{tpu_custom_call.1} parent=5 // pred_check_branch
        %128 = sbr.rel (%p125) target = $region12
      $region11: #{tpu_custom_call.1} parent=5 // pred_region
        %s129 = ssub.s32 %s16, 1
        // Predicated region
        $region13: #{tpu_custom_call.1} parent=11 // pred_check
          %p130 = pneg %p37
        $region14: #{tpu_custom_call.1} parent=11 // pred_check_branch
          %132 = sbr.rel (%p130) target = $region16
        $region15: #{tpu_custom_call.1} parent=11 // pred_region
          %s134 = ssub.s32 1024, 1024
          %135 = vsyncadd [#allocation3], %s134
          %s137 = sshll.u32 [#allocation2], 4
          %s138 = int_to_ptr.vmem [resolvable:$true] %s137
          %140 = dma.hbm_to_vmem [thread:$0]  %s0, 1024, %s138, [#allocation3]
        $region16: #{tpu_custom_call.1} parent=11 // pred_fallthru
          _
      $region12: #{tpu_custom_call.1} parent=5 // pred_fallthru
        _
      %p141 = scmp.lt.s32.totalorder %s16, 2
      // Predicated region
      $region17: #{tpu_custom_call.1} parent=5 // pred_check
        %p142 = pneg %p141
      $region18: #{tpu_custom_call.1} parent=5 // pred_check_branch
        %144 = sbr.rel (%p142) target = $region20
      $region19: #{tpu_custom_call.1} parent=5 // pred_region
        // Predicated region
        $region21: #{tpu_custom_call.1} parent=19 // pred_check
          %p145 = pneg %p57
        $region22: #{tpu_custom_call.1} parent=19 // pred_check_branch
          %147 = sbr.rel (%p145) target = $region24
        $region23: #{tpu_custom_call.1} parent=19 // pred_region
          %s148 = sand.u32 %s16, 1
          %s149 = scalar_lea.sflag [#allocation6], %s148
          %s150 = sand.u32 %s47, 1
          %s151 = smul.addr %s150, 4096
          %s152 = scalar_lea.vmem [#allocation5], %s151
          %s153 = smul.u32 64, %s16
          %s155 = ssub.s32 65536, 65536
          %156 = vsyncadd %s149, %s155
          %s157 = smul.addr %s153, 8
          %s158 = smul.addr %s157, 128
          %s159 = scalar_lea.hbm %s1, %s158
          %s160 = sshll.u32 %s152, 4
          %s161 = int_to_ptr.vmem [resolvable:$true] %s160
          %166 = dma.hbm_to_vmem [thread:$0]  %s159, 65536, %s161, %s149, 1024, 1024, 64
        $region24: #{tpu_custom_call.1} parent=19 // pred_fallthru
          _
        // Predicated region
        $region25: #{tpu_custom_call.1} parent=19 // pred_check
          %p167 = pneg %p83
        $region26: #{tpu_custom_call.1} parent=19 // pred_check_branch
          %169 = sbr.rel (%p167) target = $region28
        $region27: #{tpu_custom_call.1} parent=19 // pred_region
          %s170 = sand.u32 %s16, 1
          %s171 = scalar_lea.sflag [#allocation6], %s170
          %s172 = sand.u32 %s73, 1
          %s173 = smul.addr %s172, 4
          %s174 = scalar_lea.vmem [#allocation7], %s173
          %s175 = smul.u32 4, %s16
          %s177 = ssub.s32 64, 64
          %178 = vsyncadd %s171, %s177
          %s179 = smul.addr %s175, 16
          %s180 = scalar_lea.hbm %s2, %s179
          %s182 = sshll.u32 %s174, 4
          %s183 = int_to_ptr.vmem [resolvable:$true] %s182
          %185 = dma.hbm_to_vmem [thread:$0]  %s180, 64, %s183, %s171
        $region28: #{tpu_custom_call.1} parent=19 // pred_fallthru
          _
      $region20: #{tpu_custom_call.1} parent=5 // pred_fallthru
        _
      %p186 = scmp.le.s32.totalorder 1, %s16
      %p187 = scmp.lt.s32.totalorder %s16, 3
      %p188 = pnand %p186, %p187
      %p189 = pneg %p188
      // Predicated region
      $region29: #{tpu_custom_call.1} parent=5 // pred_check
        _
      $region30: #{tpu_custom_call.1} parent=5 // pred_check_branch
        %191 = sbr.rel (%p188) target = $region32
      $region31: #{tpu_custom_call.1} parent=5 // pred_region
        %s192 = ssub.s32 %s16, 1
        // Predicated region
        $region33: #{tpu_custom_call.1} parent=31 // pred_check
          %p193 = pneg %p37
        $region34: #{tpu_custom_call.1} parent=31 // pred_check_branch
          %195 = sbr.rel (%p193) target = $region36
        $region35: #{tpu_custom_call.1} parent=31 // pred_region
          %196 = dma.done [#allocation3], 1024
        $region36: #{tpu_custom_call.1} parent=31 // pred_fallthru
          _
        %s197 = sand.u32 %s21, 1
        %s198 = scalar_lea.sflag [#allocation6], %s197
        %s199 = sand.u32 %s50, 1
        %s200 = smul.addr %s199, 4096
        %s201 = scalar_lea.vmem [#allocation5], %s200
        // Predicated region
        $region37: #{tpu_custom_call.1} parent=31 // pred_check
          %p202 = pneg %p63
        $region38: #{tpu_custom_call.1} parent=31 // pred_check_branch
          %204 = sbr.rel (%p202) target = $region40
        $region39: #{tpu_custom_call.1} parent=31 // pred_region
          %205 = dma.done %s198, 65536
        $region40: #{tpu_custom_call.1} parent=31 // pred_fallthru
          _
        %s206 = sand.u32 %s21, 1
        %s207 = scalar_lea.sflag [#allocation6], %s206
        %s208 = sand.u32 %s76, 1
        %s209 = smul.addr %s208, 4
        %s210 = scalar_lea.vmem [#allocation7], %s209
        // Predicated region
        $region41: #{tpu_custom_call.1} parent=31 // pred_check
          %p211 = pneg %p89
        $region42: #{tpu_custom_call.1} parent=31 // pred_check_branch
          %213 = sbr.rel (%p211) target = $region44
        $region43: #{tpu_custom_call.1} parent=31 // pred_region
          %214 = dma.done %s207, 64
        $region44: #{tpu_custom_call.1} parent=31 // pred_fallthru
          _
        %p215 = pneg %p37
        %p216 = pneg %p34
        %s217 = sand.u32 %s21, 1
        %s218 = scalar_lea.sflag [#allocation6], %s217
        %s219 = sand.u32 %s50, 1
        %s220 = smul.addr %s219, 4096
        %s221 = scalar_lea.vmem [#allocation5], %s220
        %p222 = pneg %p63
        %p223 = pneg %p60
        %s224 = sand.u32 %s21, 1
        %s225 = scalar_lea.sflag [#allocation6], %s224
        %s226 = sand.u32 %s76, 1
        %s227 = smul.addr %s226, 4
        %s228 = scalar_lea.vmem [#allocation7], %s227
        %p229 = pneg %p89
        %p230 = pneg %p86
        %p231 = pneg %p115
        %p232 = pneg %p112
        %s233 = sand.u32 %s102, 1
        %s234 = scalar_lea.sflag [#allocation4], %s233
        %s235 = sand.u32 %s102, 1
        %s236 = smul.addr %s235, 32
        %s237 = scalar_lea.vmem [#allocation8], %s236
        %s238 = smul.u32 64, %s21
        %s239 = smul.u32 4, %s21
        %s240 = smul.u32 4, %s21
        %v241 = vld [vmem:[#allocation2] sm:$0xff]
        %v242 = vld [vmem:[#allocation2 + $0x8] sm:$0xff]
        %v243 = vld [vmem:[#allocation2 + $0x10] sm:$0xff]
        %v244 = vld [vmem:[#allocation2 + $0x18] sm:$0xff]
        %v245 = vld [vmem:[#allocation2 + $0x20] sm:$0xff]
        %v246 = vld [vmem:[#allocation2 + $0x28] sm:$0xff]
        %v247 = vld [vmem:[#allocation2 + $0x30] sm:$0xff]
        %v248 = vld [vmem:[#allocation2 + $0x38] sm:$0xff]
        %v249 = vld [vmem:[%s201] sm:$0xff]
        %v250 = vld [vmem:[%s201 + $0x8] sm:$0xff]
        %v251 = vld [vmem:[%s201 + $0x10] sm:$0xff]
        %v252 = vld [vmem:[%s201 + $0x18] sm:$0xff]
        %v253 = vld [vmem:[%s201 + $0x20] sm:$0xff]
        %v254 = vld [vmem:[%s201 + $0x28] sm:$0xff]
        %v255 = vld [vmem:[%s201 + $0x30] sm:$0xff]
        %v256 = vld [vmem:[%s201 + $0x38] sm:$0xff]
        %v257 = vld [vmem:[%s201 + $0x40] sm:$0xff]
        %v258 = vld [vmem:[%s201 + $0x48] sm:$0xff]
        %v259 = vld [vmem:[%s201 + $0x50] sm:$0xff]
        %v260 = vld [vmem:[%s201 + $0x58] sm:$0xff]
        %v261 = vld [vmem:[%s201 + $0x60] sm:$0xff]
        %v262 = vld [vmem:[%s201 + $0x68] sm:$0xff]
        %v263 = vld [vmem:[%s201 + $0x70] sm:$0xff]
        %v264 = vld [vmem:[%s201 + $0x78] sm:$0xff]
        %v265 = vld [vmem:[%s201 + $0x80] sm:$0xff]
        %v266 = vld [vmem:[%s201 + $0x88] sm:$0xff]
        %v267 = vld [vmem:[%s201 + $0x90] sm:$0xff]
        %v268 = vld [vmem:[%s201 + $0x98] sm:$0xff]
        %v269 = vld [vmem:[%s201 + $0xa0] sm:$0xff]
        %v270 = vld [vmem:[%s201 + $0xa8] sm:$0xff]
        %v271 = vld [vmem:[%s201 + $0xb0] sm:$0xff]
        %v272 = vld [vmem:[%s201 + $0xb8] sm:$0xff]
        %v273 = vld [vmem:[%s201 + $0xc0] sm:$0xff]
        %v274 = vld [vmem:[%s201 + $0xc8] sm:$0xff]
        %v275 = vld [vmem:[%s201 + $0xd0] sm:$0xff]
        %v276 = vld [vmem:[%s201 + $0xd8] sm:$0xff]
        %v277 = vld [vmem:[%s201 + $0xe0] sm:$0xff]
        %v278 = vld [vmem:[%s201 + $0xe8] sm:$0xff]
        %v279 = vld [vmem:[%s201 + $0xf0] sm:$0xff]
        %v280 = vld [vmem:[%s201 + $0xf8] sm:$0xff]
        %v281 = vld [vmem:[%s201 + $0x100] sm:$0xff]
        %v282 = vld [vmem:[%s201 + $0x108] sm:$0xff]
        %v283 = vld [vmem:[%s201 + $0x110] sm:$0xff]
        %v284 = vld [vmem:[%s201 + $0x118] sm:$0xff]
        %v285 = vld [vmem:[%s201 + $0x120] sm:$0xff]
        %v286 = vld [vmem:[%s201 + $0x128] sm:$0xff]
        %v287 = vld [vmem:[%s201 + $0x130] sm:$0xff]
        %v288 = vld [vmem:[%s201 + $0x138] sm:$0xff]
        %v289 = vld [vmem:[%s201 + $0x140] sm:$0xff]
        %v290 = vld [vmem:[%s201 + $0x148] sm:$0xff]
        %v291 = vld [vmem:[%s201 + $0x150] sm:$0xff]
        %v292 = vld [vmem:[%s201 + $0x158] sm:$0xff]
        %v293 = vld [vmem:[%s201 + $0x160] sm:$0xff]
        %v294 = vld [vmem:[%s201 + $0x168] sm:$0xff]
        %v295 = vld [vmem:[%s201 + $0x170] sm:$0xff]
        %v296 = vld [vmem:[%s201 + $0x178] sm:$0xff]
        %v297 = vld [vmem:[%s201 + $0x180] sm:$0xff]
        %v298 = vld [vmem:[%s201 + $0x188] sm:$0xff]
        %v299 = vld [vmem:[%s201 + $0x190] sm:$0xff]
        %v300 = vld [vmem:[%s201 + $0x198] sm:$0xff]
        %v301 = vld [vmem:[%s201 + $0x1a0] sm:$0xff]
        %v302 = vld [vmem:[%s201 + $0x1a8] sm:$0xff]
        %v303 = vld [vmem:[%s201 + $0x1b0] sm:$0xff]
        %v304 = vld [vmem:[%s201 + $0x1b8] sm:$0xff]
        %v305 = vld [vmem:[%s201 + $0x1c0] sm:$0xff]
        %v306 = vld [vmem:[%s201 + $0x1c8] sm:$0xff]
        %v307 = vld [vmem:[%s201 + $0x1d0] sm:$0xff]
        %v308 = vld [vmem:[%s201 + $0x1d8] sm:$0xff]
        %v309 = vld [vmem:[%s201 + $0x1e0] sm:$0xff]
        %v310 = vld [vmem:[%s201 + $0x1e8] sm:$0xff]
        %v311 = vld [vmem:[%s201 + $0x1f0] sm:$0xff]
        %v312 = vld [vmem:[%s201 + $0x1f8] sm:$0xff]
        %v313 = vld [vmem:[%s201 + $0x200] sm:$0xff]
        %v314 = vld [vmem:[%s201 + $0x208] sm:$0xff]
        %v315 = vld [vmem:[%s201 + $0x210] sm:$0xff]
        %v316 = vld [vmem:[%s201 + $0x218] sm:$0xff]
        %v317 = vld [vmem:[%s201 + $0x220] sm:$0xff]
        %v318 = vld [vmem:[%s201 + $0x228] sm:$0xff]
        %v319 = vld [vmem:[%s201 + $0x230] sm:$0xff]
        %v320 = vld [vmem:[%s201 + $0x238] sm:$0xff]
        %v321 = vld [vmem:[%s201 + $0x240] sm:$0xff]
        %v322 = vld [vmem:[%s201 + $0x248] sm:$0xff]
        %v323 = vld [vmem:[%s201 + $0x250] sm:$0xff]
        %v324 = vld [vmem:[%s201 + $0x258] sm:$0xff]
        %v325 = vld [vmem:[%s201 + $0x260] sm:$0xff]
        %v326 = vld [vmem:[%s201 + $0x268] sm:$0xff]
        %v327 = vld [vmem:[%s201 + $0x270] sm:$0xff]
        %v328 = vld [vmem:[%s201 + $0x278] sm:$0xff]
        %v329 = vld [vmem:[%s201 + $0x280] sm:$0xff]
        %v330 = vld [vmem:[%s201 + $0x288] sm:$0xff]
        %v331 = vld [vmem:[%s201 + $0x290] sm:$0xff]
        %v332 = vld [vmem:[%s201 + $0x298] sm:$0xff]
        %v333 = vld [vmem:[%s201 + $0x2a0] sm:$0xff]
        %v334 = vld [vmem:[%s201 + $0x2a8] sm:$0xff]
        %v335 = vld [vmem:[%s201 + $0x2b0] sm:$0xff]
        %v336 = vld [vmem:[%s201 + $0x2b8] sm:$0xff]
        %v337 = vld [vmem:[%s201 + $0x2c0] sm:$0xff]
        %v338 = vld [vmem:[%s201 + $0x2c8] sm:$0xff]
        %v339 = vld [vmem:[%s201 + $0x2d0] sm:$0xff]
        %v340 = vld [vmem:[%s201 + $0x2d8] sm:$0xff]
        %v341 = vld [vmem:[%s201 + $0x2e0] sm:$0xff]
        %v342 = vld [vmem:[%s201 + $0x2e8] sm:$0xff]
        %v343 = vld [vmem:[%s201 + $0x2f0] sm:$0xff]
        %v344 = vld [vmem:[%s201 + $0x2f8] sm:$0xff]
        %v345 = vld [vmem:[%s201 + $0x300] sm:$0xff]
        %v346 = vld [vmem:[%s201 + $0x308] sm:$0xff]
        %v347 = vld [vmem:[%s201 + $0x310] sm:$0xff]
        %v348 = vld [vmem:[%s201 + $0x318] sm:$0xff]
        %v349 = vld [vmem:[%s201 + $0x320] sm:$0xff]
        %v350 = vld [vmem:[%s201 + $0x328] sm:$0xff]
        %v351 = vld [vmem:[%s201 + $0x330] sm:$0xff]
        %v352 = vld [vmem:[%s201 + $0x338] sm:$0xff]
        %v353 = vld [vmem:[%s201 + $0x340] sm:$0xff]
        %v354 = vld [vmem:[%s201 + $0x348] sm:$0xff]
        %v355 = vld [vmem:[%s201 + $0x350] sm:$0xff]
        %v356 = vld [vmem:[%s201 + $0x358] sm:$0xff]
        %v357 = vld [vmem:[%s201 + $0x360] sm:$0xff]
        %v358 = vld [vmem:[%s201 + $0x368] sm:$0xff]
        %v359 = vld [vmem:[%s201 + $0x370] sm:$0xff]
        %v360 = vld [vmem:[%s201 + $0x378] sm:$0xff]
        %v361 = vld [vmem:[%s201 + $0x380] sm:$0xff]
        %v362 = vld [vmem:[%s201 + $0x388] sm:$0xff]
        %v363 = vld [vmem:[%s201 + $0x390] sm:$0xff]
        %v364 = vld [vmem:[%s201 + $0x398] sm:$0xff]
        %v365 = vld [vmem:[%s201 + $0x3a0] sm:$0xff]
        %v366 = vld [vmem:[%s201 + $0x3a8] sm:$0xff]
        %v367 = vld [vmem:[%s201 + $0x3b0] sm:$0xff]
        %v368 = vld [vmem:[%s201 + $0x3b8] sm:$0xff]
        %v369 = vld [vmem:[%s201 + $0x3c0] sm:$0xff]
        %v370 = vld [vmem:[%s201 + $0x3c8] sm:$0xff]
        %v371 = vld [vmem:[%s201 + $0x3d0] sm:$0xff]
        %v372 = vld [vmem:[%s201 + $0x3d8] sm:$0xff]
        %v373 = vld [vmem:[%s201 + $0x3e0] sm:$0xff]
        %v374 = vld [vmem:[%s201 + $0x3e8] sm:$0xff]
        %v375 = vld [vmem:[%s201 + $0x3f0] sm:$0xff]
        %v376 = vld [vmem:[%s201 + $0x3f8] sm:$0xff]
        %v377 = vld [vmem:[%s201 + $0x400] sm:$0xff]
        %v378 = vld [vmem:[%s201 + $0x408] sm:$0xff]
        %v379 = vld [vmem:[%s201 + $0x410] sm:$0xff]
        %v380 = vld [vmem:[%s201 + $0x418] sm:$0xff]
        %v381 = vld [vmem:[%s201 + $0x420] sm:$0xff]
        %v382 = vld [vmem:[%s201 + $0x428] sm:$0xff]
        %v383 = vld [vmem:[%s201 + $0x430] sm:$0xff]
        %v384 = vld [vmem:[%s201 + $0x438] sm:$0xff]
        %v385 = vld [vmem:[%s201 + $0x440] sm:$0xff]
        %v386 = vld [vmem:[%s201 + $0x448] sm:$0xff]
        %v387 = vld [vmem:[%s201 + $0x450] sm:$0xff]
        %v388 = vld [vmem:[%s201 + $0x458] sm:$0xff]
        %v389 = vld [vmem:[%s201 + $0x460] sm:$0xff]
        %v390 = vld [vmem:[%s201 + $0x468] sm:$0xff]
        %v391 = vld [vmem:[%s201 + $0x470] sm:$0xff]
        %v392 = vld [vmem:[%s201 + $0x478] sm:$0xff]
        %v393 = vld [vmem:[%s201 + $0x480] sm:$0xff]
        %v394 = vld [vmem:[%s201 + $0x488] sm:$0xff]
        %v395 = vld [vmem:[%s201 + $0x490] sm:$0xff]
        %v396 = vld [vmem:[%s201 + $0x498] sm:$0xff]
        %v397 = vld [vmem:[%s201 + $0x4a0] sm:$0xff]
        %v398 = vld [vmem:[%s201 + $0x4a8] sm:$0xff]
        %v399 = vld [vmem:[%s201 + $0x4b0] sm:$0xff]
        %v400 = vld [vmem:[%s201 + $0x4b8] sm:$0xff]
        %v401 = vld [vmem:[%s201 + $0x4c0] sm:$0xff]
        %v402 = vld [vmem:[%s201 + $0x4c8] sm:$0xff]
        %v403 = vld [vmem:[%s201 + $0x4d0] sm:$0xff]
        %v404 = vld [vmem:[%s201 + $0x4d8] sm:$0xff]
        %v405 = vld [vmem:[%s201 + $0x4e0] sm:$0xff]
        %v406 = vld [vmem:[%s201 + $0x4e8] sm:$0xff]
        %v407 = vld [vmem:[%s201 + $0x4f0] sm:$0xff]
        %v408 = vld [vmem:[%s201 + $0x4f8] sm:$0xff]
        %v409 = vld [vmem:[%s201 + $0x500] sm:$0xff]
        %v410 = vld [vmem:[%s201 + $0x508] sm:$0xff]
        %v411 = vld [vmem:[%s201 + $0x510] sm:$0xff]
        %v412 = vld [vmem:[%s201 + $0x518] sm:$0xff]
        %v413 = vld [vmem:[%s201 + $0x520] sm:$0xff]
        %v414 = vld [vmem:[%s201 + $0x528] sm:$0xff]
        %v415 = vld [vmem:[%s201 + $0x530] sm:$0xff]
        %v416 = vld [vmem:[%s201 + $0x538] sm:$0xff]
        %v417 = vld [vmem:[%s201 + $0x540] sm:$0xff]
        %v418 = vld [vmem:[%s201 + $0x548] sm:$0xff]
        %v419 = vld [vmem:[%s201 + $0x550] sm:$0xff]
        %v420 = vld [vmem:[%s201 + $0x558] sm:$0xff]
        %v421 = vld [vmem:[%s201 + $0x560] sm:$0xff]
        %v422 = vld [vmem:[%s201 + $0x568] sm:$0xff]
        %v423 = vld [vmem:[%s201 + $0x570] sm:$0xff]
        %v424 = vld [vmem:[%s201 + $0x578] sm:$0xff]
        %v425 = vld [vmem:[%s201 + $0x580] sm:$0xff]
        %v426 = vld [vmem:[%s201 + $0x588] sm:$0xff]
        %v427 = vld [vmem:[%s201 + $0x590] sm:$0xff]
        %v428 = vld [vmem:[%s201 + $0x598] sm:$0xff]
        %v429 = vld [vmem:[%s201 + $0x5a0] sm:$0xff]
        %v430 = vld [vmem:[%s201 + $0x5a8] sm:$0xff]
        %v431 = vld [vmem:[%s201 + $0x5b0] sm:$0xff]
        %v432 = vld [vmem:[%s201 + $0x5b8] sm:$0xff]
        %v433 = vld [vmem:[%s201 + $0x5c0] sm:$0xff]
        %v434 = vld [vmem:[%s201 + $0x5c8] sm:$0xff]
        %v435 = vld [vmem:[%s201 + $0x5d0] sm:$0xff]
        %v436 = vld [vmem:[%s201 + $0x5d8] sm:$0xff]
        %v437 = vld [vmem:[%s201 + $0x5e0] sm:$0xff]
        %v438 = vld [vmem:[%s201 + $0x5e8] sm:$0xff]
        %v439 = vld [vmem:[%s201 + $0x5f0] sm:$0xff]
        %v440 = vld [vmem:[%s201 + $0x5f8] sm:$0xff]
        %v441 = vld [vmem:[%s201 + $0x600] sm:$0xff]
        %v442 = vld [vmem:[%s201 + $0x608] sm:$0xff]
        %v443 = vld [vmem:[%s201 + $0x610] sm:$0xff]
        %v444 = vld [vmem:[%s201 + $0x618] sm:$0xff]
        %v445 = vld [vmem:[%s201 + $0x620] sm:$0xff]
        %v446 = vld [vmem:[%s201 + $0x628] sm:$0xff]
        %v447 = vld [vmem:[%s201 + $0x630] sm:$0xff]
        %v448 = vld [vmem:[%s201 + $0x638] sm:$0xff]
        %v449 = vld [vmem:[%s201 + $0x640] sm:$0xff]
        %v450 = vld [vmem:[%s201 + $0x648] sm:$0xff]
        %v451 = vld [vmem:[%s201 + $0x650] sm:$0xff]
        %v452 = vld [vmem:[%s201 + $0x658] sm:$0xff]
        %v453 = vld [vmem:[%s201 + $0x660] sm:$0xff]
        %v454 = vld [vmem:[%s201 + $0x668] sm:$0xff]
        %v455 = vld [vmem:[%s201 + $0x670] sm:$0xff]
        %v456 = vld [vmem:[%s201 + $0x678] sm:$0xff]
        %v457 = vld [vmem:[%s201 + $0x680] sm:$0xff]
        %v458 = vld [vmem:[%s201 + $0x688] sm:$0xff]
        %v459 = vld [vmem:[%s201 + $0x690] sm:$0xff]
        %v460 = vld [vmem:[%s201 + $0x698] sm:$0xff]
        %v461 = vld [vmem:[%s201 + $0x6a0] sm:$0xff]
        %v462 = vld [vmem:[%s201 + $0x6a8] sm:$0xff]
        %v463 = vld [vmem:[%s201 + $0x6b0] sm:$0xff]
        %v464 = vld [vmem:[%s201 + $0x6b8] sm:$0xff]
        %v465 = vld [vmem:[%s201 + $0x6c0] sm:$0xff]
        %v466 = vld [vmem:[%s201 + $0x6c8] sm:$0xff]
        %v467 = vld [vmem:[%s201 + $0x6d0] sm:$0xff]
        %v468 = vld [vmem:[%s201 + $0x6d8] sm:$0xff]
        %v469 = vld [vmem:[%s201 + $0x6e0] sm:$0xff]
        %v470 = vld [vmem:[%s201 + $0x6e8] sm:$0xff]
        %v471 = vld [vmem:[%s201 + $0x6f0] sm:$0xff]
        %v472 = vld [vmem:[%s201 + $0x6f8] sm:$0xff]
        %v473 = vld [vmem:[%s201 + $0x700] sm:$0xff]
        %v474 = vld [vmem:[%s201 + $0x708] sm:$0xff]
        %v475 = vld [vmem:[%s201 + $0x710] sm:$0xff]
        %v476 = vld [vmem:[%s201 + $0x718] sm:$0xff]
        %v477 = vld [vmem:[%s201 + $0x720] sm:$0xff]
        %v478 = vld [vmem:[%s201 + $0x728] sm:$0xff]
        %v479 = vld [vmem:[%s201 + $0x730] sm:$0xff]
        %v480 = vld [vmem:[%s201 + $0x738] sm:$0xff]
        %v481 = vld [vmem:[%s201 + $0x740] sm:$0xff]
        %v482 = vld [vmem:[%s201 + $0x748] sm:$0xff]
        %v483 = vld [vmem:[%s201 + $0x750] sm:$0xff]
        %v484 = vld [vmem:[%s201 + $0x758] sm:$0xff]
        %v485 = vld [vmem:[%s201 + $0x760] sm:$0xff]
        %v486 = vld [vmem:[%s201 + $0x768] sm:$0xff]
        %v487 = vld [vmem:[%s201 + $0x770] sm:$0xff]
        %v488 = vld [vmem:[%s201 + $0x778] sm:$0xff]
        %v489 = vld [vmem:[%s201 + $0x780] sm:$0xff]
        %v490 = vld [vmem:[%s201 + $0x788] sm:$0xff]
        %v491 = vld [vmem:[%s201 + $0x790] sm:$0xff]
        %v492 = vld [vmem:[%s201 + $0x798] sm:$0xff]
        %v493 = vld [vmem:[%s201 + $0x7a0] sm:$0xff]
        %v494 = vld [vmem:[%s201 + $0x7a8] sm:$0xff]
        %v495 = vld [vmem:[%s201 + $0x7b0] sm:$0xff]
        %v496 = vld [vmem:[%s201 + $0x7b8] sm:$0xff]
        %v497 = vld [vmem:[%s201 + $0x7c0] sm:$0xff]
        %v498 = vld [vmem:[%s201 + $0x7c8] sm:$0xff]
        %v499 = vld [vmem:[%s201 + $0x7d0] sm:$0xff]
        %v500 = vld [vmem:[%s201 + $0x7d8] sm:$0xff]
        %v501 = vld [vmem:[%s201 + $0x7e0] sm:$0xff]
        %v502 = vld [vmem:[%s201 + $0x7e8] sm:$0xff]
        %v503 = vld [vmem:[%s201 + $0x7f0] sm:$0xff]
        %v504 = vld [vmem:[%s201 + $0x7f8] sm:$0xff]
        %v505 = vld [vmem:[%s201 + $0x800] sm:$0xff]
        %v506 = vld [vmem:[%s201 + $0x808] sm:$0xff]
        %v507 = vld [vmem:[%s201 + $0x810] sm:$0xff]
        %v508 = vld [vmem:[%s201 + $0x818] sm:$0xff]
        %v509 = vld [vmem:[%s201 + $0x820] sm:$0xff]
        %v510 = vld [vmem:[%s201 + $0x828] sm:$0xff]
        %v511 = vld [vmem:[%s201 + $0x830] sm:$0xff]
        %v512 = vld [vmem:[%s201 + $0x838] sm:$0xff]
        %v513 = vld [vmem:[%s201 + $0x840] sm:$0xff]
        %v514 = vld [vmem:[%s201 + $0x848] sm:$0xff]
        %v515 = vld [vmem:[%s201 + $0x850] sm:$0xff]
        %v516 = vld [vmem:[%s201 + $0x858] sm:$0xff]
        %v517 = vld [vmem:[%s201 + $0x860] sm:$0xff]
        %v518 = vld [vmem:[%s201 + $0x868] sm:$0xff]
        %v519 = vld [vmem:[%s201 + $0x870] sm:$0xff]
        %v520 = vld [vmem:[%s201 + $0x878] sm:$0xff]
        %v521 = vld [vmem:[%s201 + $0x880] sm:$0xff]
        %v522 = vld [vmem:[%s201 + $0x888] sm:$0xff]
        %v523 = vld [vmem:[%s201 + $0x890] sm:$0xff]
        %v524 = vld [vmem:[%s201 + $0x898] sm:$0xff]
        %v525 = vld [vmem:[%s201 + $0x8a0] sm:$0xff]
        %v526 = vld [vmem:[%s201 + $0x8a8] sm:$0xff]
        %v527 = vld [vmem:[%s201 + $0x8b0] sm:$0xff]
        %v528 = vld [vmem:[%s201 + $0x8b8] sm:$0xff]
        %v529 = vld [vmem:[%s201 + $0x8c0] sm:$0xff]
        %v530 = vld [vmem:[%s201 + $0x8c8] sm:$0xff]
        %v531 = vld [vmem:[%s201 + $0x8d0] sm:$0xff]
        %v532 = vld [vmem:[%s201 + $0x8d8] sm:$0xff]
        %v533 = vld [vmem:[%s201 + $0x8e0] sm:$0xff]
        %v534 = vld [vmem:[%s201 + $0x8e8] sm:$0xff]
        %v535 = vld [vmem:[%s201 + $0x8f0] sm:$0xff]
        %v536 = vld [vmem:[%s201 + $0x8f8] sm:$0xff]
        %v537 = vld [vmem:[%s201 + $0x900] sm:$0xff]
        %v538 = vld [vmem:[%s201 + $0x908] sm:$0xff]
        %v539 = vld [vmem:[%s201 + $0x910] sm:$0xff]
        %v540 = vld [vmem:[%s201 + $0x918] sm:$0xff]
        %v541 = vld [vmem:[%s201 + $0x920] sm:$0xff]
        %v542 = vld [vmem:[%s201 + $0x928] sm:$0xff]
        %v543 = vld [vmem:[%s201 + $0x930] sm:$0xff]
        %v544 = vld [vmem:[%s201 + $0x938] sm:$0xff]
        %v545 = vld [vmem:[%s201 + $0x940] sm:$0xff]
        %v546 = vld [vmem:[%s201 + $0x948] sm:$0xff]
        %v547 = vld [vmem:[%s201 + $0x950] sm:$0xff]
        %v548 = vld [vmem:[%s201 + $0x958] sm:$0xff]
        %v549 = vld [vmem:[%s201 + $0x960] sm:$0xff]
        %v550 = vld [vmem:[%s201 + $0x968] sm:$0xff]
        %v551 = vld [vmem:[%s201 + $0x970] sm:$0xff]
        %v552 = vld [vmem:[%s201 + $0x978] sm:$0xff]
        %v553 = vld [vmem:[%s201 + $0x980] sm:$0xff]
        %v554 = vld [vmem:[%s201 + $0x988] sm:$0xff]
        %v555 = vld [vmem:[%s201 + $0x990] sm:$0xff]
        %v556 = vld [vmem:[%s201 + $0x998] sm:$0xff]
        %v557 = vld [vmem:[%s201 + $0x9a0] sm:$0xff]
        %v558 = vld [vmem:[%s201 + $0x9a8] sm:$0xff]
        %v559 = vld [vmem:[%s201 + $0x9b0] sm:$0xff]
        %v560 = vld [vmem:[%s201 + $0x9b8] sm:$0xff]
        %v561 = vld [vmem:[%s201 + $0x9c0] sm:$0xff]
        %v562 = vld [vmem:[%s201 + $0x9c8] sm:$0xff]
        %v563 = vld [vmem:[%s201 + $0x9d0] sm:$0xff]
        %v564 = vld [vmem:[%s201 + $0x9d8] sm:$0xff]
        %v565 = vld [vmem:[%s201 + $0x9e0] sm:$0xff]
        %v566 = vld [vmem:[%s201 + $0x9e8] sm:$0xff]
        %v567 = vld [vmem:[%s201 + $0x9f0] sm:$0xff]
        %v568 = vld [vmem:[%s201 + $0x9f8] sm:$0xff]
        %v569 = vld [vmem:[%s201 + $0xa00] sm:$0xff]
        %v570 = vld [vmem:[%s201 + $0xa08] sm:$0xff]
        %v571 = vld [vmem:[%s201 + $0xa10] sm:$0xff]
        %v572 = vld [vmem:[%s201 + $0xa18] sm:$0xff]
        %v573 = vld [vmem:[%s201 + $0xa20] sm:$0xff]
        %v574 = vld [vmem:[%s201 + $0xa28] sm:$0xff]
        %v575 = vld [vmem:[%s201 + $0xa30] sm:$0xff]
        %v576 = vld [vmem:[%s201 + $0xa38] sm:$0xff]
        %v577 = vld [vmem:[%s201 + $0xa40] sm:$0xff]
        %v578 = vld [vmem:[%s201 + $0xa48] sm:$0xff]
        %v579 = vld [vmem:[%s201 + $0xa50] sm:$0xff]
        %v580 = vld [vmem:[%s201 + $0xa58] sm:$0xff]
        %v581 = vld [vmem:[%s201 + $0xa60] sm:$0xff]
        %v582 = vld [vmem:[%s201 + $0xa68] sm:$0xff]
        %v583 = vld [vmem:[%s201 + $0xa70] sm:$0xff]
        %v584 = vld [vmem:[%s201 + $0xa78] sm:$0xff]
        %v585 = vld [vmem:[%s201 + $0xa80] sm:$0xff]
        %v586 = vld [vmem:[%s201 + $0xa88] sm:$0xff]
        %v587 = vld [vmem:[%s201 + $0xa90] sm:$0xff]
        %v588 = vld [vmem:[%s201 + $0xa98] sm:$0xff]
        %v589 = vld [vmem:[%s201 + $0xaa0] sm:$0xff]
        %v590 = vld [vmem:[%s201 + $0xaa8] sm:$0xff]
        %v591 = vld [vmem:[%s201 + $0xab0] sm:$0xff]
        %v592 = vld [vmem:[%s201 + $0xab8] sm:$0xff]
        %v593 = vld [vmem:[%s201 + $0xac0] sm:$0xff]
        %v594 = vld [vmem:[%s201 + $0xac8] sm:$0xff]
        %v595 = vld [vmem:[%s201 + $0xad0] sm:$0xff]
        %v596 = vld [vmem:[%s201 + $0xad8] sm:$0xff]
        %v597 = vld [vmem:[%s201 + $0xae0] sm:$0xff]
        %v598 = vld [vmem:[%s201 + $0xae8] sm:$0xff]
        %v599 = vld [vmem:[%s201 + $0xaf0] sm:$0xff]
        %v600 = vld [vmem:[%s201 + $0xaf8] sm:$0xff]
        %v601 = vld [vmem:[%s201 + $0xb00] sm:$0xff]
        %v602 = vld [vmem:[%s201 + $0xb08] sm:$0xff]
        %v603 = vld [vmem:[%s201 + $0xb10] sm:$0xff]
        %v604 = vld [vmem:[%s201 + $0xb18] sm:$0xff]
        %v605 = vld [vmem:[%s201 + $0xb20] sm:$0xff]
        %v606 = vld [vmem:[%s201 + $0xb28] sm:$0xff]
        %v607 = vld [vmem:[%s201 + $0xb30] sm:$0xff]
        %v608 = vld [vmem:[%s201 + $0xb38] sm:$0xff]
        %v609 = vld [vmem:[%s201 + $0xb40] sm:$0xff]
        %v610 = vld [vmem:[%s201 + $0xb48] sm:$0xff]
        %v611 = vld [vmem:[%s201 + $0xb50] sm:$0xff]
        %v612 = vld [vmem:[%s201 + $0xb58] sm:$0xff]
        %v613 = vld [vmem:[%s201 + $0xb60] sm:$0xff]
        %v614 = vld [vmem:[%s201 + $0xb68] sm:$0xff]
        %v615 = vld [vmem:[%s201 + $0xb70] sm:$0xff]
        %v616 = vld [vmem:[%s201 + $0xb78] sm:$0xff]
        %v617 = vld [vmem:[%s201 + $0xb80] sm:$0xff]
        %v618 = vld [vmem:[%s201 + $0xb88] sm:$0xff]
        %v619 = vld [vmem:[%s201 + $0xb90] sm:$0xff]
        %v620 = vld [vmem:[%s201 + $0xb98] sm:$0xff]
        %v621 = vld [vmem:[%s201 + $0xba0] sm:$0xff]
        %v622 = vld [vmem:[%s201 + $0xba8] sm:$0xff]
        %v623 = vld [vmem:[%s201 + $0xbb0] sm:$0xff]
        %v624 = vld [vmem:[%s201 + $0xbb8] sm:$0xff]
        %v625 = vld [vmem:[%s201 + $0xbc0] sm:$0xff]
        %v626 = vld [vmem:[%s201 + $0xbc8] sm:$0xff]
        %v627 = vld [vmem:[%s201 + $0xbd0] sm:$0xff]
        %v628 = vld [vmem:[%s201 + $0xbd8] sm:$0xff]
        %v629 = vld [vmem:[%s201 + $0xbe0] sm:$0xff]
        %v630 = vld [vmem:[%s201 + $0xbe8] sm:$0xff]
        %v631 = vld [vmem:[%s201 + $0xbf0] sm:$0xff]
        %v632 = vld [vmem:[%s201 + $0xbf8] sm:$0xff]
        %v633 = vld [vmem:[%s201 + $0xc00] sm:$0xff]
        %v634 = vld [vmem:[%s201 + $0xc08] sm:$0xff]
        %v635 = vld [vmem:[%s201 + $0xc10] sm:$0xff]
        %v636 = vld [vmem:[%s201 + $0xc18] sm:$0xff]
        %v637 = vld [vmem:[%s201 + $0xc20] sm:$0xff]
        %v638 = vld [vmem:[%s201 + $0xc28] sm:$0xff]
        %v639 = vld [vmem:[%s201 + $0xc30] sm:$0xff]
        %v640 = vld [vmem:[%s201 + $0xc38] sm:$0xff]
        %v641 = vld [vmem:[%s201 + $0xc40] sm:$0xff]
        %v642 = vld [vmem:[%s201 + $0xc48] sm:$0xff]
        %v643 = vld [vmem:[%s201 + $0xc50] sm:$0xff]
        %v644 = vld [vmem:[%s201 + $0xc58] sm:$0xff]
        %v645 = vld [vmem:[%s201 + $0xc60] sm:$0xff]
        %v646 = vld [vmem:[%s201 + $0xc68] sm:$0xff]
        %v647 = vld [vmem:[%s201 + $0xc70] sm:$0xff]
        %v648 = vld [vmem:[%s201 + $0xc78] sm:$0xff]
        %v649 = vld [vmem:[%s201 + $0xc80] sm:$0xff]
        %v650 = vld [vmem:[%s201 + $0xc88] sm:$0xff]
        %v651 = vld [vmem:[%s201 + $0xc90] sm:$0xff]
        %v652 = vld [vmem:[%s201 + $0xc98] sm:$0xff]
        %v653 = vld [vmem:[%s201 + $0xca0] sm:$0xff]
        %v654 = vld [vmem:[%s201 + $0xca8] sm:$0xff]
        %v655 = vld [vmem:[%s201 + $0xcb0] sm:$0xff]
        %v656 = vld [vmem:[%s201 + $0xcb8] sm:$0xff]
        %v657 = vld [vmem:[%s201 + $0xcc0] sm:$0xff]
        %v658 = vld [vmem:[%s201 + $0xcc8] sm:$0xff]
        %v659 = vld [vmem:[%s201 + $0xcd0] sm:$0xff]
        %v660 = vld [vmem:[%s201 + $0xcd8] sm:$0xff]
        %v661 = vld [vmem:[%s201 + $0xce0] sm:$0xff]
        %v662 = vld [vmem:[%s201 + $0xce8] sm:$0xff]
        %v663 = vld [vmem:[%s201 + $0xcf0] sm:$0xff]
        %v664 = vld [vmem:[%s201 + $0xcf8] sm:$0xff]
        %v665 = vld [vmem:[%s201 + $0xd00] sm:$0xff]
        %v666 = vld [vmem:[%s201 + $0xd08] sm:$0xff]
        %v667 = vld [vmem:[%s201 + $0xd10] sm:$0xff]
        %v668 = vld [vmem:[%s201 + $0xd18] sm:$0xff]
        %v669 = vld [vmem:[%s201 + $0xd20] sm:$0xff]
        %v670 = vld [vmem:[%s201 + $0xd28] sm:$0xff]
        %v671 = vld [vmem:[%s201 + $0xd30] sm:$0xff]
        %v672 = vld [vmem:[%s201 + $0xd38] sm:$0xff]
        %v673 = vld [vmem:[%s201 + $0xd40] sm:$0xff]
        %v674 = vld [vmem:[%s201 + $0xd48] sm:$0xff]
        %v675 = vld [vmem:[%s201 + $0xd50] sm:$0xff]
        %v676 = vld [vmem:[%s201 + $0xd58] sm:$0xff]
        %v677 = vld [vmem:[%s201 + $0xd60] sm:$0xff]
        %v678 = vld [vmem:[%s201 + $0xd68] sm:$0xff]
        %v679 = vld [vmem:[%s201 + $0xd70] sm:$0xff]
        %v680 = vld [vmem:[%s201 + $0xd78] sm:$0xff]
        %v681 = vld [vmem:[%s201 + $0xd80] sm:$0xff]
        %v682 = vld [vmem:[%s201 + $0xd88] sm:$0xff]
        %v683 = vld [vmem:[%s201 + $0xd90] sm:$0xff]
        %v684 = vld [vmem:[%s201 + $0xd98] sm:$0xff]
        %v685 = vld [vmem:[%s201 + $0xda0] sm:$0xff]
        %v686 = vld [vmem:[%s201 + $0xda8] sm:$0xff]
        %v687 = vld [vmem:[%s201 + $0xdb0] sm:$0xff]
        %v688 = vld [vmem:[%s201 + $0xdb8] sm:$0xff]
        %v689 = vld [vmem:[%s201 + $0xdc0] sm:$0xff]
        %v690 = vld [vmem:[%s201 + $0xdc8] sm:$0xff]
        %v691 = vld [vmem:[%s201 + $0xdd0] sm:$0xff]
        %v692 = vld [vmem:[%s201 + $0xdd8] sm:$0xff]
        %v693 = vld [vmem:[%s201 + $0xde0] sm:$0xff]
        %v694 = vld [vmem:[%s201 + $0xde8] sm:$0xff]
        %v695 = vld [vmem:[%s201 + $0xdf0] sm:$0xff]
        %v696 = vld [vmem:[%s201 + $0xdf8] sm:$0xff]
        %v697 = vld [vmem:[%s201 + $0xe00] sm:$0xff]
        %v698 = vld [vmem:[%s201 + $0xe08] sm:$0xff]
        %v699 = vld [vmem:[%s201 + $0xe10] sm:$0xff]
        %v700 = vld [vmem:[%s201 + $0xe18] sm:$0xff]
        %v701 = vld [vmem:[%s201 + $0xe20] sm:$0xff]
        %v702 = vld [vmem:[%s201 + $0xe28] sm:$0xff]
        %v703 = vld [vmem:[%s201 + $0xe30] sm:$0xff]
        %v704 = vld [vmem:[%s201 + $0xe38] sm:$0xff]
        %v705 = vld [vmem:[%s201 + $0xe40] sm:$0xff]
        %v706 = vld [vmem:[%s201 + $0xe48] sm:$0xff]
        %v707 = vld [vmem:[%s201 + $0xe50] sm:$0xff]
        %v708 = vld [vmem:[%s201 + $0xe58] sm:$0xff]
        %v709 = vld [vmem:[%s201 + $0xe60] sm:$0xff]
        %v710 = vld [vmem:[%s201 + $0xe68] sm:$0xff]
        %v711 = vld [vmem:[%s201 + $0xe70] sm:$0xff]
        %v712 = vld [vmem:[%s201 + $0xe78] sm:$0xff]
        %v713 = vld [vmem:[%s201 + $0xe80] sm:$0xff]
        %v714 = vld [vmem:[%s201 + $0xe88] sm:$0xff]
        %v715 = vld [vmem:[%s201 + $0xe90] sm:$0xff]
        %v716 = vld [vmem:[%s201 + $0xe98] sm:$0xff]
        %v717 = vld [vmem:[%s201 + $0xea0] sm:$0xff]
        %v718 = vld [vmem:[%s201 + $0xea8] sm:$0xff]
        %v719 = vld [vmem:[%s201 + $0xeb0] sm:$0xff]
        %v720 = vld [vmem:[%s201 + $0xeb8] sm:$0xff]
        %v721 = vld [vmem:[%s201 + $0xec0] sm:$0xff]
        %v722 = vld [vmem:[%s201 + $0xec8] sm:$0xff]
        %v723 = vld [vmem:[%s201 + $0xed0] sm:$0xff]
        %v724 = vld [vmem:[%s201 + $0xed8] sm:$0xff]
        %v725 = vld [vmem:[%s201 + $0xee0] sm:$0xff]
        %v726 = vld [vmem:[%s201 + $0xee8] sm:$0xff]
        %v727 = vld [vmem:[%s201 + $0xef0] sm:$0xff]
        %v728 = vld [vmem:[%s201 + $0xef8] sm:$0xff]
        %v729 = vld [vmem:[%s201 + $0xf00] sm:$0xff]
        %v730 = vld [vmem:[%s201 + $0xf08] sm:$0xff]
        %v731 = vld [vmem:[%s201 + $0xf10] sm:$0xff]
        %v732 = vld [vmem:[%s201 + $0xf18] sm:$0xff]
        %v733 = vld [vmem:[%s201 + $0xf20] sm:$0xff]
        %v734 = vld [vmem:[%s201 + $0xf28] sm:$0xff]
        %v735 = vld [vmem:[%s201 + $0xf30] sm:$0xff]
        %v736 = vld [vmem:[%s201 + $0xf38] sm:$0xff]
        %v737 = vld [vmem:[%s201 + $0xf40] sm:$0xff]
        %v738 = vld [vmem:[%s201 + $0xf48] sm:$0xff]
        %v739 = vld [vmem:[%s201 + $0xf50] sm:$0xff]
        %v740 = vld [vmem:[%s201 + $0xf58] sm:$0xff]
        %v741 = vld [vmem:[%s201 + $0xf60] sm:$0xff]
        %v742 = vld [vmem:[%s201 + $0xf68] sm:$0xff]
        %v743 = vld [vmem:[%s201 + $0xf70] sm:$0xff]
        %v744 = vld [vmem:[%s201 + $0xf78] sm:$0xff]
        %v745 = vld [vmem:[%s201 + $0xf80] sm:$0xff]
        %v746 = vld [vmem:[%s201 + $0xf88] sm:$0xff]
        %v747 = vld [vmem:[%s201 + $0xf90] sm:$0xff]
        %v748 = vld [vmem:[%s201 + $0xf98] sm:$0xff]
        %v749 = vld [vmem:[%s201 + $0xfa0] sm:$0xff]
        %v750 = vld [vmem:[%s201 + $0xfa8] sm:$0xff]
        %v751 = vld [vmem:[%s201 + $0xfb0] sm:$0xff]
        %v752 = vld [vmem:[%s201 + $0xfb8] sm:$0xff]
        %v753 = vld [vmem:[%s201 + $0xfc0] sm:$0xff]
        %v754 = vld [vmem:[%s201 + $0xfc8] sm:$0xff]
        %v755 = vld [vmem:[%s201 + $0xfd0] sm:$0xff]
        %v756 = vld [vmem:[%s201 + $0xfd8] sm:$0xff]
        %v757 = vld [vmem:[%s201 + $0xfe0] sm:$0xff]
        %v758 = vld [vmem:[%s201 + $0xfe8] sm:$0xff]
        %v759 = vld [vmem:[%s201 + $0xff0] sm:$0xff]
        %v760 = vld [vmem:[%s201 + $0xff8] sm:$0xff]
        %v761 = vld [vmem:[%s210] sm:$0xf]
        %v763 = vlaneseq
        %v764 = vshrl.u32 %v763, 7
        %v765 = vsub.s32 0, %v764
        %v766 = vrot.slane %v761, %v765
        %v767 = vlaneseq
        %v768 = vshrl.u32 %v767, 7
        %v769 = vsub.s32 1, %v768
        %v770 = vrot.slane %v761, %v769
        %v771 = vlaneseq
        %v772 = vshrl.u32 %v771, 7
        %v773 = vsub.s32 2, %v772
        %v774 = vrot.slane %v761, %v773
        %v775 = vlaneseq
        %v776 = vshrl.u32 %v775, 7
        %v777 = vsub.s32 3, %v776
        %v778 = vrot.slane %v761, %v777
        %783 = vmatprep.subr.mxu0 %v370
        %784 = vmatpush1.xpose.msra.mxu0 %v369
        %785 = vmatprep.subr.mxu0 %v362
        %786 = vmatpush1.xpose.msra.mxu0 %v361
        %787 = vmatprep.subr.mxu0 %v354
        %788 = vmatpush1.xpose.msra.mxu0 %v353
        %789 = vmatprep.subr.mxu0 %v346
        %790 = vmatpush1.xpose.msra.mxu0 %v345
        %791 = vmatprep.subr.mxu0 %v338
        %792 = vmatpush1.xpose.msra.mxu0 %v337
        %793 = vmatprep.subr.mxu0 %v330
        %794 = vmatpush1.xpose.msra.mxu0 %v329
        %795 = vmatprep.subr.mxu0 %v322
        %796 = vmatpush1.xpose.msra.mxu0 %v321
        %797 = vmatprep.subr.mxu0 %v314
        %798 = vmatpush1.xpose.msra.mxu0 %v313
        %799 = vmatprep.subr.mxu0 %v306
        %800 = vmatpush1.xpose.msra.mxu0 %v305
        %801 = vmatprep.subr.mxu0 %v298
        %802 = vmatpush1.xpose.msra.mxu0 %v297
        %803 = vmatprep.subr.mxu0 %v290
        %804 = vmatpush1.xpose.msra.mxu0 %v289
        %805 = vmatprep.subr.mxu0 %v282
        %806 = vmatpush1.xpose.msra.mxu0 %v281
        %807 = vmatprep.subr.mxu0 %v274
        %808 = vmatpush1.xpose.msra.mxu0 %v273
        %809 = vmatprep.subr.mxu0 %v266
        %810 = vmatpush1.xpose.msra.mxu0 %v265
        %811 = vmatprep.subr.mxu0 %v258
        %812 = vmatpush1.xpose.msra.mxu0 %v257
        %813 = vmatprep.subr.mxu0 %v250
        %814 = vmatpush1.xpose.msra.mxu0 %v249
        %815 = vmatprep.subr.mxu0 %v498
        %816 = vmatpush2.xpose.msra.mxu0 %v497
        %817 = vmatprep.subr.mxu0 %v490
        %818 = vmatpush2.xpose.msra.mxu0 %v489
        %819 = vmatprep.subr.mxu0 %v482
        %820 = vmatpush2.xpose.msra.mxu0 %v481
        %821 = vmatprep.subr.mxu0 %v474
        %822 = vmatpush2.xpose.msra.mxu0 %v473
        %823 = vmatprep.subr.mxu0 %v466
        %824 = vmatpush2.xpose.msra.mxu0 %v465
        %825 = vmatprep.subr.mxu0 %v458
        %826 = vmatpush2.xpose.msra.mxu0 %v457
        %827 = vmatprep.subr.mxu0 %v450
        %828 = vmatpush2.xpose.msra.mxu0 %v449
        %829 = vmatprep.subr.mxu0 %v442
        %830 = vmatpush2.xpose.msra.mxu0 %v441
        %831 = vmatprep.subr.mxu0 %v434
        %832 = vmatpush2.xpose.msra.mxu0 %v433
        %833 = vmatprep.subr.mxu0 %v426
        %834 = vmatpush2.xpose.msra.mxu0 %v425
        %835 = vmatprep.subr.mxu0 %v418
        %836 = vmatpush2.xpose.msra.mxu0 %v417
        %837 = vmatprep.subr.mxu0 %v410
        %838 = vmatpush2.xpose.msra.mxu0 %v409
        %839 = vmatprep.subr.mxu0 %v402
        %840 = vmatpush2.xpose.msra.mxu0 %v401
        %841 = vmatprep.subr.mxu0 %v394
        %842 = vmatpush2.xpose.msra.mxu0 %v393
        %843 = vmatprep.subr.mxu0 %v386
        %844 = vmatpush2.xpose.msra.mxu0 %v385
        %845 = vmatprep.subr.mxu0 %v378
        %846 = vmatpush2.xpose.msra.mxu0 %v377
        %847 = vmatprep.mubr.f32.mxu0 %v242
        %848 = vmatmul.mubr.f32.gmra.mxu0 %v241
        %v849 = vpop.f32.mrf.mxu0
        %v850 = vadd.f32 %v766, %v849
        %v851 = vpop.f32.mrf.mxu0
        %v852 = vadd.f32 %v770, %v851
        %853 = vdwg.mxu0
        %854 = vmatprep.subr.mxu0 %v372
        %855 = vmatpush1.xpose.msra.mxu0 %v371
        %856 = vmatprep.subr.mxu0 %v364
        %857 = vmatpush1.xpose.msra.mxu0 %v363
        %858 = vmatprep.subr.mxu0 %v356
        %859 = vmatpush1.xpose.msra.mxu0 %v355
        %860 = vmatprep.subr.mxu0 %v348
        %861 = vmatpush1.xpose.msra.mxu0 %v347
        %862 = vmatprep.subr.mxu0 %v340
        %863 = vmatpush1.xpose.msra.mxu0 %v339
        %864 = vmatprep.subr.mxu0 %v332
        %865 = vmatpush1.xpose.msra.mxu0 %v331
        %866 = vmatprep.subr.mxu0 %v324
        %867 = vmatpush1.xpose.msra.mxu0 %v323
        %868 = vmatprep.subr.mxu0 %v316
        %869 = vmatpush1.xpose.msra.mxu0 %v315
        %870 = vmatprep.subr.mxu0 %v308
        %871 = vmatpush1.xpose.msra.mxu0 %v307
        %872 = vmatprep.subr.mxu0 %v300
        %873 = vmatpush1.xpose.msra.mxu0 %v299
        %874 = vmatprep.subr.mxu0 %v292
        %875 = vmatpush1.xpose.msra.mxu0 %v291
        %876 = vmatprep.subr.mxu0 %v284
        %877 = vmatpush1.xpose.msra.mxu0 %v283
        %878 = vmatprep.subr.mxu0 %v276
        %879 = vmatpush1.xpose.msra.mxu0 %v275
        %880 = vmatprep.subr.mxu0 %v268
        %881 = vmatpush1.xpose.msra.mxu0 %v267
        %882 = vmatprep.subr.mxu0 %v260
        %883 = vmatpush1.xpose.msra.mxu0 %v259
        %884 = vmatprep.subr.mxu0 %v252
        %885 = vmatpush1.xpose.msra.mxu0 %v251
        %886 = vmatprep.subr.mxu0 %v500
        %887 = vmatpush2.xpose.msra.mxu0 %v499
        %888 = vmatprep.subr.mxu0 %v492
        %889 = vmatpush2.xpose.msra.mxu0 %v491
        %890 = vmatprep.subr.mxu0 %v484
        %891 = vmatpush2.xpose.msra.mxu0 %v483
        %892 = vmatprep.subr.mxu0 %v476
        %893 = vmatpush2.xpose.msra.mxu0 %v475
        %894 = vmatprep.subr.mxu0 %v468
        %895 = vmatpush2.xpose.msra.mxu0 %v467
        %896 = vmatprep.subr.mxu0 %v460
        %897 = vmatpush2.xpose.msra.mxu0 %v459
        %898 = vmatprep.subr.mxu0 %v452
        %899 = vmatpush2.xpose.msra.mxu0 %v451
        %900 = vmatprep.subr.mxu0 %v444
        %901 = vmatpush2.xpose.msra.mxu0 %v443
        %902 = vmatprep.subr.mxu0 %v436
        %903 = vmatpush2.xpose.msra.mxu0 %v435
        %904 = vmatprep.subr.mxu0 %v428
        %905 = vmatpush2.xpose.msra.mxu0 %v427
        %906 = vmatprep.subr.mxu0 %v420
        %907 = vmatpush2.xpose.msra.mxu0 %v419
        %908 = vmatprep.subr.mxu0 %v412
        %909 = vmatpush2.xpose.msra.mxu0 %v411
        %910 = vmatprep.subr.mxu0 %v404
        %911 = vmatpush2.xpose.msra.mxu0 %v403
        %912 = vmatprep.subr.mxu0 %v396
        %913 = vmatpush2.xpose.msra.mxu0 %v395
        %914 = vmatprep.subr.mxu0 %v388
        %915 = vmatpush2.xpose.msra.mxu0 %v387
        %916 = vmatprep.subr.mxu0 %v380
        %917 = vmatpush2.xpose.msra.mxu0 %v379
        %918 = vmatprep.mubr.f32.mxu0 %v244
        %919 = vmatmul.mubr.f32.gmra.mxu0 %v243
        %v920 = vpop.f32.mrf.mxu0
        %v921 = vadd.f32 %v850, %v920
        %v922 = vpop.f32.mrf.mxu0
        %v923 = vadd.f32 %v852, %v922
        %924 = vdwg.mxu0
        %925 = vmatprep.subr.mxu0 %v374
        %926 = vmatpush1.xpose.msra.mxu0 %v373
        %927 = vmatprep.subr.mxu0 %v366
        %928 = vmatpush1.xpose.msra.mxu0 %v365
        %929 = vmatprep.subr.mxu0 %v358
        %930 = vmatpush1.xpose.msra.mxu0 %v357
        %931 = vmatprep.subr.mxu0 %v350
        %932 = vmatpush1.xpose.msra.mxu0 %v349
        %933 = vmatprep.subr.mxu0 %v342
        %934 = vmatpush1.xpose.msra.mxu0 %v341
        %935 = vmatprep.subr.mxu0 %v334
        %936 = vmatpush1.xpose.msra.mxu0 %v333
        %937 = vmatprep.subr.mxu0 %v326
        %938 = vmatpush1.xpose.msra.mxu0 %v325
        %939 = vmatprep.subr.mxu0 %v318
        %940 = vmatpush1.xpose.msra.mxu0 %v317
        %941 = vmatprep.subr.mxu0 %v310
        %942 = vmatpush1.xpose.msra.mxu0 %v309
        %943 = vmatprep.subr.mxu0 %v302
        %944 = vmatpush1.xpose.msra.mxu0 %v301
        %945 = vmatprep.subr.mxu0 %v294
        %946 = vmatpush1.xpose.msra.mxu0 %v293
        %947 = vmatprep.subr.mxu0 %v286
        %948 = vmatpush1.xpose.msra.mxu0 %v285
        %949 = vmatprep.subr.mxu0 %v278
        %950 = vmatpush1.xpose.msra.mxu0 %v277
        %951 = vmatprep.subr.mxu0 %v270
        %952 = vmatpush1.xpose.msra.mxu0 %v269
        %953 = vmatprep.subr.mxu0 %v262
        %954 = vmatpush1.xpose.msra.mxu0 %v261
        %955 = vmatprep.subr.mxu0 %v254
        %956 = vmatpush1.xpose.msra.mxu0 %v253
        %957 = vmatprep.subr.mxu0 %v502
        %958 = vmatpush2.xpose.msra.mxu0 %v501
        %959 = vmatprep.subr.mxu0 %v494
        %960 = vmatpush2.xpose.msra.mxu0 %v493
        %961 = vmatprep.subr.mxu0 %v486
        %962 = vmatpush2.xpose.msra.mxu0 %v485
        %963 = vmatprep.subr.mxu0 %v478
        %964 = vmatpush2.xpose.msra.mxu0 %v477
        %965 = vmatprep.subr.mxu0 %v470
        %966 = vmatpush2.xpose.msra.mxu0 %v469
        %967 = vmatprep.subr.mxu0 %v462
        %968 = vmatpush2.xpose.msra.mxu0 %v461
        %969 = vmatprep.subr.mxu0 %v454
        %970 = vmatpush2.xpose.msra.mxu0 %v453
        %971 = vmatprep.subr.mxu0 %v446
        %972 = vmatpush2.xpose.msra.mxu0 %v445
        %973 = vmatprep.subr.mxu0 %v438
        %974 = vmatpush2.xpose.msra.mxu0 %v437
        %975 = vmatprep.subr.mxu0 %v430
        %976 = vmatpush2.xpose.msra.mxu0 %v429
        %977 = vmatprep.subr.mxu0 %v422
        %978 = vmatpush2.xpose.msra.mxu0 %v421
        %979 = vmatprep.subr.mxu0 %v414
        %980 = vmatpush2.xpose.msra.mxu0 %v413
        %981 = vmatprep.subr.mxu0 %v406
        %982 = vmatpush2.xpose.msra.mxu0 %v405
        %983 = vmatprep.subr.mxu0 %v398
        %984 = vmatpush2.xpose.msra.mxu0 %v397
        %985 = vmatprep.subr.mxu0 %v390
        %986 = vmatpush2.xpose.msra.mxu0 %v389
        %987 = vmatprep.subr.mxu0 %v382
        %988 = vmatpush2.xpose.msra.mxu0 %v381
        %989 = vmatprep.mubr.f32.mxu0 %v246
        %990 = vmatmul.mubr.f32.gmra.mxu0 %v245
        %v991 = vpop.f32.mrf.mxu0
        %v992 = vadd.f32 %v921, %v991
        %v993 = vpop.f32.mrf.mxu0
        %v994 = vadd.f32 %v923, %v993
        %995 = vdwg.mxu0
        %996 = vmatprep.subr.mxu0 %v376
        %997 = vmatpush1.xpose.msra.mxu0 %v375
        %998 = vmatprep.subr.mxu0 %v368
        %999 = vmatpush1.xpose.msra.mxu0 %v367
        %1000 = vmatprep.subr.mxu0 %v360
        %1001 = vmatpush1.xpose.msra.mxu0 %v359
        %1002 = vmatprep.subr.mxu0 %v352
        %1003 = vmatpush1.xpose.msra.mxu0 %v351
        %1004 = vmatprep.subr.mxu0 %v344
        %1005 = vmatpush1.xpose.msra.mxu0 %v343
        %1006 = vmatprep.subr.mxu0 %v336
        %1007 = vmatpush1.xpose.msra.mxu0 %v335
        %1008 = vmatprep.subr.mxu0 %v328
        %1009 = vmatpush1.xpose.msra.mxu0 %v327
        %1010 = vmatprep.subr.mxu0 %v320
        %1011 = vmatpush1.xpose.msra.mxu0 %v319
        %1012 = vmatprep.subr.mxu0 %v312
        %1013 = vmatpush1.xpose.msra.mxu0 %v311
        %1014 = vmatprep.subr.mxu0 %v304
        %1015 = vmatpush1.xpose.msra.mxu0 %v303
        %1016 = vmatprep.subr.mxu0 %v296
        %1017 = vmatpush1.xpose.msra.mxu0 %v295
        %1018 = vmatprep.subr.mxu0 %v288
        %1019 = vmatpush1.xpose.msra.mxu0 %v287
        %1020 = vmatprep.subr.mxu0 %v280
        %1021 = vmatpush1.xpose.msra.mxu0 %v279
        %1022 = vmatprep.subr.mxu0 %v272
        %1023 = vmatpush1.xpose.msra.mxu0 %v271
        %1024 = vmatprep.subr.mxu0 %v264
        %1025 = vmatpush1.xpose.msra.mxu0 %v263
        %1026 = vmatprep.subr.mxu0 %v256
        %1027 = vmatpush1.xpose.msra.mxu0 %v255
        %1028 = vmatprep.subr.mxu0 %v504
        %1029 = vmatpush2.xpose.msra.mxu0 %v503
        %1030 = vmatprep.subr.mxu0 %v496
        %1031 = vmatpush2.xpose.msra.mxu0 %v495
        %1032 = vmatprep.subr.mxu0 %v488
        %1033 = vmatpush2.xpose.msra.mxu0 %v487
        %1034 = vmatprep.subr.mxu0 %v480
        %1035 = vmatpush2.xpose.msra.mxu0 %v479
        %1036 = vmatprep.subr.mxu0 %v472
        %1037 = vmatpush2.xpose.msra.mxu0 %v471
        %1038 = vmatprep.subr.mxu0 %v464
        %1039 = vmatpush2.xpose.msra.mxu0 %v463
        %1040 = vmatprep.subr.mxu0 %v456
        %1041 = vmatpush2.xpose.msra.mxu0 %v455
        %1042 = vmatprep.subr.mxu0 %v448
        %1043 = vmatpush2.xpose.msra.mxu0 %v447
        %1044 = vmatprep.subr.mxu0 %v440
        %1045 = vmatpush2.xpose.msra.mxu0 %v439
        %1046 = vmatprep.subr.mxu0 %v432
        %1047 = vmatpush2.xpose.msra.mxu0 %v431
        %1048 = vmatprep.subr.mxu0 %v424
        %1049 = vmatpush2.xpose.msra.mxu0 %v423
        %1050 = vmatprep.subr.mxu0 %v416
        %1051 = vmatpush2.xpose.msra.mxu0 %v415
        %1052 = vmatprep.subr.mxu0 %v408
        %1053 = vmatpush2.xpose.msra.mxu0 %v407
        %1054 = vmatprep.subr.mxu0 %v400
        %1055 = vmatpush2.xpose.msra.mxu0 %v399
        %1056 = vmatprep.subr.mxu0 %v392
        %1057 = vmatpush2.xpose.msra.mxu0 %v391
        %1058 = vmatprep.subr.mxu0 %v384
        %1059 = vmatpush2.xpose.msra.mxu0 %v383
        %1060 = vmatprep.mubr.f32.mxu0 %v248
        %1061 = vmatmul.mubr.f32.gmra.mxu0 %v247
        %v1062 = vpop.f32.mrf.mxu0
        %v1063 = vadd.f32 %v992, %v1062
        %v1064 = vpop.f32.mrf.mxu0
        %v1065 = vadd.f32 %v994, %v1064
        %1066 = vdwg.mxu0
        %1067 = vmatprep.subr.mxu0 %v626
        %1068 = vmatpush1.xpose.msra.mxu0 %v625
        %1069 = vmatprep.subr.mxu0 %v618
        %1070 = vmatpush1.xpose.msra.mxu0 %v617
        %1071 = vmatprep.subr.mxu0 %v610
        %1072 = vmatpush1.xpose.msra.mxu0 %v609
        %1073 = vmatprep.subr.mxu0 %v602
        %1074 = vmatpush1.xpose.msra.mxu0 %v601
        %1075 = vmatprep.subr.mxu0 %v594
        %1076 = vmatpush1.xpose.msra.mxu0 %v593
        %1077 = vmatprep.subr.mxu0 %v586
        %1078 = vmatpush1.xpose.msra.mxu0 %v585
        %1079 = vmatprep.subr.mxu0 %v578
        %1080 = vmatpush1.xpose.msra.mxu0 %v577
        %1081 = vmatprep.subr.mxu0 %v570
        %1082 = vmatpush1.xpose.msra.mxu0 %v569
        %1083 = vmatprep.subr.mxu0 %v562
        %1084 = vmatpush1.xpose.msra.mxu0 %v561
        %1085 = vmatprep.subr.mxu0 %v554
        %1086 = vmatpush1.xpose.msra.mxu0 %v553
        %1087 = vmatprep.subr.mxu0 %v546
        %1088 = vmatpush1.xpose.msra.mxu0 %v545
        %1089 = vmatprep.subr.mxu0 %v538
        %1090 = vmatpush1.xpose.msra.mxu0 %v537
        %1091 = vmatprep.subr.mxu0 %v530
        %1092 = vmatpush1.xpose.msra.mxu0 %v529
        %1093 = vmatprep.subr.mxu0 %v522
        %1094 = vmatpush1.xpose.msra.mxu0 %v521
        %1095 = vmatprep.subr.mxu0 %v514
        %1096 = vmatpush1.xpose.msra.mxu0 %v513
        %1097 = vmatprep.subr.mxu0 %v506
        %1098 = vmatpush1.xpose.msra.mxu0 %v505
        %1099 = vmatprep.subr.mxu0 %v754
        %1100 = vmatpush2.xpose.msra.mxu0 %v753
        %1101 = vmatprep.subr.mxu0 %v746
        %1102 = vmatpush2.xpose.msra.mxu0 %v745
        %1103 = vmatprep.subr.mxu0 %v738
        %1104 = vmatpush2.xpose.msra.mxu0 %v737
        %1105 = vmatprep.subr.mxu0 %v730
        %1106 = vmatpush2.xpose.msra.mxu0 %v729
        %1107 = vmatprep.subr.mxu0 %v722
        %1108 = vmatpush2.xpose.msra.mxu0 %v721
        %1109 = vmatprep.subr.mxu0 %v714
        %1110 = vmatpush2.xpose.msra.mxu0 %v713
        %1111 = vmatprep.subr.mxu0 %v706
        %1112 = vmatpush2.xpose.msra.mxu0 %v705
        %1113 = vmatprep.subr.mxu0 %v698
        %1114 = vmatpush2.xpose.msra.mxu0 %v697
        %1115 = vmatprep.subr.mxu0 %v690
        %1116 = vmatpush2.xpose.msra.mxu0 %v689
        %1117 = vmatprep.subr.mxu0 %v682
        %1118 = vmatpush2.xpose.msra.mxu0 %v681
        %1119 = vmatprep.subr.mxu0 %v674
        %1120 = vmatpush2.xpose.msra.mxu0 %v673
        %1121 = vmatprep.subr.mxu0 %v666
        %1122 = vmatpush2.xpose.msra.mxu0 %v665
        %1123 = vmatprep.subr.mxu0 %v658
        %1124 = vmatpush2.xpose.msra.mxu0 %v657
        %1125 = vmatprep.subr.mxu0 %v650
        %1126 = vmatpush2.xpose.msra.mxu0 %v649
        %1127 = vmatprep.subr.mxu0 %v642
        %1128 = vmatpush2.xpose.msra.mxu0 %v641
        %1129 = vmatprep.subr.mxu0 %v634
        %1130 = vmatpush2.xpose.msra.mxu0 %v633
        %1131 = vmatprep.mubr.f32.mxu0 %v242
        %1132 = vmatmul.mubr.f32.gmra.mxu0 %v241
        %v1133 = vpop.f32.mrf.mxu0
        %v1134 = vadd.f32 %v774, %v1133
        %v1135 = vpop.f32.mrf.mxu0
        %v1136 = vadd.f32 %v778, %v1135
        %1137 = vdwg.mxu0
        %1138 = vmatprep.subr.mxu0 %v628
        %1139 = vmatpush1.xpose.msra.mxu0 %v627
        %1140 = vmatprep.subr.mxu0 %v620
        %1141 = vmatpush1.xpose.msra.mxu0 %v619
        %1142 = vmatprep.subr.mxu0 %v612
        %1143 = vmatpush1.xpose.msra.mxu0 %v611
        %1144 = vmatprep.subr.mxu0 %v604
        %1145 = vmatpush1.xpose.msra.mxu0 %v603
        %1146 = vmatprep.subr.mxu0 %v596
        %1147 = vmatpush1.xpose.msra.mxu0 %v595
        %1148 = vmatprep.subr.mxu0 %v588
        %1149 = vmatpush1.xpose.msra.mxu0 %v587
        %1150 = vmatprep.subr.mxu0 %v580
        %1151 = vmatpush1.xpose.msra.mxu0 %v579
        %1152 = vmatprep.subr.mxu0 %v572
        %1153 = vmatpush1.xpose.msra.mxu0 %v571
        %1154 = vmatprep.subr.mxu0 %v564
        %1155 = vmatpush1.xpose.msra.mxu0 %v563
        %1156 = vmatprep.subr.mxu0 %v556
        %1157 = vmatpush1.xpose.msra.mxu0 %v555
        %1158 = vmatprep.subr.mxu0 %v548
        %1159 = vmatpush1.xpose.msra.mxu0 %v547
        %1160 = vmatprep.subr.mxu0 %v540
        %1161 = vmatpush1.xpose.msra.mxu0 %v539
        %1162 = vmatprep.subr.mxu0 %v532
        %1163 = vmatpush1.xpose.msra.mxu0 %v531
        %1164 = vmatprep.subr.mxu0 %v524
        %1165 = vmatpush1.xpose.msra.mxu0 %v523
        %1166 = vmatprep.subr.mxu0 %v516
        %1167 = vmatpush1.xpose.msra.mxu0 %v515
        %1168 = vmatprep.subr.mxu0 %v508
        %1169 = vmatpush1.xpose.msra.mxu0 %v507
        %1170 = vmatprep.subr.mxu0 %v756
        %1171 = vmatpush2.xpose.msra.mxu0 %v755
        %1172 = vmatprep.subr.mxu0 %v748
        %1173 = vmatpush2.xpose.msra.mxu0 %v747
        %1174 = vmatprep.subr.mxu0 %v740
        %1175 = vmatpush2.xpose.msra.mxu0 %v739
        %1176 = vmatprep.subr.mxu0 %v732
        %1177 = vmatpush2.xpose.msra.mxu0 %v731
        %1178 = vmatprep.subr.mxu0 %v724
        %1179 = vmatpush2.xpose.msra.mxu0 %v723
        %1180 = vmatprep.subr.mxu0 %v716
        %1181 = vmatpush2.xpose.msra.mxu0 %v715
        %1182 = vmatprep.subr.mxu0 %v708
        %1183 = vmatpush2.xpose.msra.mxu0 %v707
        %1184 = vmatprep.subr.mxu0 %v700
        %1185 = vmatpush2.xpose.msra.mxu0 %v699
        %1186 = vmatprep.subr.mxu0 %v692
        %1187 = vmatpush2.xpose.msra.mxu0 %v691
        %1188 = vmatprep.subr.mxu0 %v684
        %1189 = vmatpush2.xpose.msra.mxu0 %v683
        %1190 = vmatprep.subr.mxu0 %v676
        %1191 = vmatpush2.xpose.msra.mxu0 %v675
        %1192 = vmatprep.subr.mxu0 %v668
        %1193 = vmatpush2.xpose.msra.mxu0 %v667
        %1194 = vmatprep.subr.mxu0 %v660
        %1195 = vmatpush2.xpose.msra.mxu0 %v659
        %1196 = vmatprep.subr.mxu0 %v652
        %1197 = vmatpush2.xpose.msra.mxu0 %v651
        %1198 = vmatprep.subr.mxu0 %v644
        %1199 = vmatpush2.xpose.msra.mxu0 %v643
        %1200 = vmatprep.subr.mxu0 %v636
        %1201 = vmatpush2.xpose.msra.mxu0 %v635
        %1202 = vmatprep.mubr.f32.mxu0 %v244
        %1203 = vmatmul.mubr.f32.gmra.mxu0 %v243
        %v1204 = vpop.f32.mrf.mxu0
        %v1205 = vadd.f32 %v1134, %v1204
        %v1206 = vpop.f32.mrf.mxu0
        %v1207 = vadd.f32 %v1136, %v1206
        %1208 = vdwg.mxu0
        %1209 = vmatprep.subr.mxu0 %v630
        %1210 = vmatpush1.xpose.msra.mxu0 %v629
        %1211 = vmatprep.subr.mxu0 %v622
        %1212 = vmatpush1.xpose.msra.mxu0 %v621
        %1213 = vmatprep.subr.mxu0 %v614
        %1214 = vmatpush1.xpose.msra.mxu0 %v613
        %1215 = vmatprep.subr.mxu0 %v606
        %1216 = vmatpush1.xpose.msra.mxu0 %v605
        %1217 = vmatprep.subr.mxu0 %v598
        %1218 = vmatpush1.xpose.msra.mxu0 %v597
        %1219 = vmatprep.subr.mxu0 %v590
        %1220 = vmatpush1.xpose.msra.mxu0 %v589
        %1221 = vmatprep.subr.mxu0 %v582
        %1222 = vmatpush1.xpose.msra.mxu0 %v581
        %1223 = vmatprep.subr.mxu0 %v574
        %1224 = vmatpush1.xpose.msra.mxu0 %v573
        %1225 = vmatprep.subr.mxu0 %v566
        %1226 = vmatpush1.xpose.msra.mxu0 %v565
        %1227 = vmatprep.subr.mxu0 %v558
        %1228 = vmatpush1.xpose.msra.mxu0 %v557
        %1229 = vmatprep.subr.mxu0 %v550
        %1230 = vmatpush1.xpose.msra.mxu0 %v549
        %1231 = vmatprep.subr.mxu0 %v542
        %1232 = vmatpush1.xpose.msra.mxu0 %v541
        %1233 = vmatprep.subr.mxu0 %v534
        %1234 = vmatpush1.xpose.msra.mxu0 %v533
        %1235 = vmatprep.subr.mxu0 %v526
        %1236 = vmatpush1.xpose.msra.mxu0 %v525
        %1237 = vmatprep.subr.mxu0 %v518
        %1238 = vmatpush1.xpose.msra.mxu0 %v517
        %1239 = vmatprep.subr.mxu0 %v510
        %1240 = vmatpush1.xpose.msra.mxu0 %v509
        %1241 = vmatprep.subr.mxu0 %v758
        %1242 = vmatpush2.xpose.msra.mxu0 %v757
        %1243 = vmatprep.subr.mxu0 %v750
        %1244 = vmatpush2.xpose.msra.mxu0 %v749
        %1245 = vmatprep.subr.mxu0 %v742
        %1246 = vmatpush2.xpose.msra.mxu0 %v741
        %1247 = vmatprep.subr.mxu0 %v734
        %1248 = vmatpush2.xpose.msra.mxu0 %v733
        %1249 = vmatprep.subr.mxu0 %v726
        %1250 = vmatpush2.xpose.msra.mxu0 %v725
        %1251 = vmatprep.subr.mxu0 %v718
        %1252 = vmatpush2.xpose.msra.mxu0 %v717
        %1253 = vmatprep.subr.mxu0 %v710
        %1254 = vmatpush2.xpose.msra.mxu0 %v709
        %1255 = vmatprep.subr.mxu0 %v702
        %1256 = vmatpush2.xpose.msra.mxu0 %v701
        %1257 = vmatprep.subr.mxu0 %v694
        %1258 = vmatpush2.xpose.msra.mxu0 %v693
        %1259 = vmatprep.subr.mxu0 %v686
        %1260 = vmatpush2.xpose.msra.mxu0 %v685
        %1261 = vmatprep.subr.mxu0 %v678
        %1262 = vmatpush2.xpose.msra.mxu0 %v677
        %1263 = vmatprep.subr.mxu0 %v670
        %1264 = vmatpush2.xpose.msra.mxu0 %v669
        %1265 = vmatprep.subr.mxu0 %v662
        %1266 = vmatpush2.xpose.msra.mxu0 %v661
        %1267 = vmatprep.subr.mxu0 %v654
        %1268 = vmatpush2.xpose.msra.mxu0 %v653
        %1269 = vmatprep.subr.mxu0 %v646
        %1270 = vmatpush2.xpose.msra.mxu0 %v645
        %1271 = vmatprep.subr.mxu0 %v638
        %1272 = vmatpush2.xpose.msra.mxu0 %v637
        %1273 = vmatprep.mubr.f32.mxu0 %v246
        %1274 = vmatmul.mubr.f32.gmra.mxu0 %v245
        %v1275 = vpop.f32.mrf.mxu0
        %v1276 = vadd.f32 %v1205, %v1275
        %v1277 = vpop.f32.mrf.mxu0
        %v1278 = vadd.f32 %v1207, %v1277
        %1279 = vdwg.mxu0
        %1280 = vmatprep.subr.mxu0 %v632
        %1281 = vmatpush1.xpose.msra.mxu0 %v631
        %1282 = vmatprep.subr.mxu0 %v624
        %1283 = vmatpush1.xpose.msra.mxu0 %v623
        %1284 = vmatprep.subr.mxu0 %v616
        %1285 = vmatpush1.xpose.msra.mxu0 %v615
        %1286 = vmatprep.subr.mxu0 %v608
        %1287 = vmatpush1.xpose.msra.mxu0 %v607
        %1288 = vmatprep.subr.mxu0 %v600
        %1289 = vmatpush1.xpose.msra.mxu0 %v599
        %1290 = vmatprep.subr.mxu0 %v592
        %1291 = vmatpush1.xpose.msra.mxu0 %v591
        %1292 = vmatprep.subr.mxu0 %v584
        %1293 = vmatpush1.xpose.msra.mxu0 %v583
        %1294 = vmatprep.subr.mxu0 %v576
        %1295 = vmatpush1.xpose.msra.mxu0 %v575
        %1296 = vmatprep.subr.mxu0 %v568
        %1297 = vmatpush1.xpose.msra.mxu0 %v567
        %1298 = vmatprep.subr.mxu0 %v560
        %1299 = vmatpush1.xpose.msra.mxu0 %v559
        %1300 = vmatprep.subr.mxu0 %v552
        %1301 = vmatpush1.xpose.msra.mxu0 %v551
        %1302 = vmatprep.subr.mxu0 %v544
        %1303 = vmatpush1.xpose.msra.mxu0 %v543
        %1304 = vmatprep.subr.mxu0 %v536
        %1305 = vmatpush1.xpose.msra.mxu0 %v535
        %1306 = vmatprep.subr.mxu0 %v528
        %1307 = vmatpush1.xpose.msra.mxu0 %v527
        %1308 = vmatprep.subr.mxu0 %v520
        %1309 = vmatpush1.xpose.msra.mxu0 %v519
        %1310 = vmatprep.subr.mxu0 %v512
        %1311 = vmatpush1.xpose.msra.mxu0 %v511
        %1312 = vmatprep.subr.mxu0 %v760
        %1313 = vmatpush2.xpose.msra.mxu0 %v759
        %1314 = vmatprep.subr.mxu0 %v752
        %1315 = vmatpush2.xpose.msra.mxu0 %v751
        %1316 = vmatprep.subr.mxu0 %v744
        %1317 = vmatpush2.xpose.msra.mxu0 %v743
        %1318 = vmatprep.subr.mxu0 %v736
        %1319 = vmatpush2.xpose.msra.mxu0 %v735
        %1320 = vmatprep.subr.mxu0 %v728
        %1321 = vmatpush2.xpose.msra.mxu0 %v727
        %1322 = vmatprep.subr.mxu0 %v720
        %1323 = vmatpush2.xpose.msra.mxu0 %v719
        %1324 = vmatprep.subr.mxu0 %v712
        %1325 = vmatpush2.xpose.msra.mxu0 %v711
        %1326 = vmatprep.subr.mxu0 %v704
        %1327 = vmatpush2.xpose.msra.mxu0 %v703
        %1328 = vmatprep.subr.mxu0 %v696
        %1329 = vmatpush2.xpose.msra.mxu0 %v695
        %1330 = vmatprep.subr.mxu0 %v688
        %1331 = vmatpush2.xpose.msra.mxu0 %v687
        %1332 = vmatprep.subr.mxu0 %v680
        %1333 = vmatpush2.xpose.msra.mxu0 %v679
        %1334 = vmatprep.subr.mxu0 %v672
        %1335 = vmatpush2.xpose.msra.mxu0 %v671
        %1336 = vmatprep.subr.mxu0 %v664
        %1337 = vmatpush2.xpose.msra.mxu0 %v663
        %1338 = vmatprep.subr.mxu0 %v656
        %1339 = vmatpush2.xpose.msra.mxu0 %v655
        %1340 = vmatprep.subr.mxu0 %v648
        %1341 = vmatpush2.xpose.msra.mxu0 %v647
        %1342 = vmatprep.subr.mxu0 %v640
        %1343 = vmatpush2.xpose.msra.mxu0 %v639
        %1344 = vmatprep.mubr.f32.mxu0 %v248
        %1345 = vmatmul.mubr.f32.gmra.mxu0 %v247
        %v1346 = vpop.f32.mrf.mxu0
        %v1347 = vadd.f32 %v1276, %v1346
        %v1348 = vpop.f32.mrf.mxu0
        %v1349 = vadd.f32 %v1278, %v1348
        %1350 = vdwg.mxu0
        %1351 = vst [vmem:[%s237] sm:$0xff] %v1063
        %1352 = vst [vmem:[%s237 + $0x8] sm:$0xff] %v1065
        %1353 = vst [vmem:[%s237 + $0x10] sm:$0xff] %v1347
        %1354 = vst [vmem:[%s237 + $0x18] sm:$0xff] %v1349
        %s1355 = sand.u32 %s102, 1
        %s1356 = scalar_lea.sflag [#allocation4], %s1355
        %s1357 = sand.u32 %s102, 1
        %s1358 = smul.addr %s1357, 32
        %s1359 = scalar_lea.vmem [#allocation8], %s1358
        // Predicated region
        $region45: #{tpu_custom_call.1} parent=31 // pred_check
          %p1360 = pneg %p112
        $region46: #{tpu_custom_call.1} parent=31 // pred_check_branch
          %1362 = sbr.rel (%p1360) target = $region48
        $region47: #{tpu_custom_call.1} parent=31 // pred_region
          %s1363 = smul.u32 4, %s21
          %s1365 = ssub.s32 512, 512
          %1366 = vsyncadd %s1356, %s1365
          %s1367 = smul.addr %s1363, 128
          %s1368 = scalar_lea.hbm %s3, %s1367
          %s1370 = sshll.u32 %s1359, 4
          %s1371 = int_to_ptr.vmem [resolvable:$true] %s1370
          %1373 = dma.vmem_to_hbm [thread:$0]  %s1371, 512, %s1368, %s1356
        $region48: #{tpu_custom_call.1} parent=31 // pred_fallthru
          _
      $region32: #{tpu_custom_call.1} parent=5 // pred_fallthru
        _
      %p1374 = scmp.le.s32.totalorder 2, %s16
      // Predicated region
      $region49: #{tpu_custom_call.1} parent=5 // pred_check
        %p1375 = pneg %p1374
      $region50: #{tpu_custom_call.1} parent=5 // pred_check_branch
        %1377 = sbr.rel (%p1375) target = $region52
      $region51: #{tpu_custom_call.1} parent=5 // pred_region
        %s1378 = ssub.s32 %s16, 2
        // Predicated region
        $region53: #{tpu_custom_call.1} parent=51 // pred_check
          %p1379 = pneg %p118
        $region54: #{tpu_custom_call.1} parent=51 // pred_check_branch
          %1381 = sbr.rel (%p1379) target = $region56
        $region55: #{tpu_custom_call.1} parent=51 // pred_region
          %s1382 = sand.u32 %s103, 1
          %s1383 = scalar_lea.sflag [#allocation4], %s1382
          %s1384 = sand.u32 %s103, 1
          %s1385 = smul.addr %s1384, 32
          %s1386 = scalar_lea.vmem [#allocation8], %s1385
          %1387 = dma.done %s1383, 512
        $region56: #{tpu_custom_call.1} parent=51 // pred_fallthru
          _
      $region52: #{tpu_custom_call.1} parent=5 // pred_fallthru
        _
    $region6: #{tpu_custom_call.1} parent=1 // loop_footer
      %s20 = sadd.s32 1, %s16
    $region7: #{tpu_custom_call.1} parent=1 // loop_footer_branch
      %15 = sbr.rel target = $region3
    $region8: #{tpu_custom_call.1} parent=1 // loop_exit
      _
    %1388 = vsyncpa [#allocation3], 1
    %s1389 = scalar_lea.sflag [#allocation3], 1
    %1390 = vsyncpa %s1389, 1
    %1391 = vsyncpa [#allocation6], 1
    %s1392 = scalar_lea.sflag [#allocation6], 1
    %1393 = vsyncpa %s1392, 1
    %1394 = vsyncpa [#allocation4], 1
    %s1395 = scalar_lea.sflag [#allocation4], 1
    %1396 = vsyncpa %s1395, 1

</llo_original>
